<compile_context>
chip_gen: v5e
topology: v5e:2x2
jax: 0.10.0
libtpu: 0.0.40
codegen_flags: <defaults>
</compile_context>

<pallas_src>
import functools

import jax
import jax.numpy as jnp
import numpy as np
from jax.experimental import pallas as pl
from jax.experimental.pallas import tpu as pltpu

T = 8        # sequence length
INPUT = 1    # LSTM input size
H = 50       # hidden size (module default)
HP = 128     # hidden size padded to one full lane-width per gate
OUT = 1      # fc output size


def lstm_fc_kernel(x_ref, wih_ref, whh_ref, b_ref, wfc_ref, bfc_ref, out_ref,
                   *, hidden_padded, seq_len):
    """Full LSTM recurrence + final Linear on the last hidden state."""
    Hp = hidden_padded

    # Hoisted input projection: (T, INPUT) @ (INPUT, 4*Hp) + bias -> (T, 4*Hp).
    # Done once, outside the serial recurrence.
    xw = (jnp.dot(x_ref[...], wih_ref[...], preferred_element_type=jnp.float32)
          + b_ref[...])

    h = jnp.zeros((1, Hp), jnp.float32)
    c = jnp.zeros((1, Hp), jnp.float32)

    # Static unroll (T is a compile-time constant): no loop bookkeeping, all
    # slices static; each gate slice below is a full 128-lane aligned block.
    # Padded lanes stay exactly zero: their gate pre-activations are 0, so
    # c_pad = 0.5*0 + 0.5*tanh(0) = 0 and h_pad = 0.5*tanh(0) = 0 every step.
    for t in range(seq_len):
        gates = (jnp.dot(h, whh_ref[...], preferred_element_type=jnp.float32)
                 + xw[t:t + 1, :])                                   # (1, 4*Hp)
        i_g = jax.nn.sigmoid(gates[:, 0 * Hp:1 * Hp])
        f_g = jax.nn.sigmoid(gates[:, 1 * Hp:2 * Hp])
        g_g = jnp.tanh(gates[:, 2 * Hp:3 * Hp])
        o_g = jax.nn.sigmoid(gates[:, 3 * Hp:4 * Hp])
        c = f_g * c + i_g * g_g
        h = o_g * jnp.tanh(c)

    # Final Linear as VPU multiply + lane reduce (OUT == 1).
    out_ref[...] = (jnp.sum(h * wfc_ref[...], axis=-1, keepdims=True)
                    + bfc_ref[...])                                  # (1, OUT)


def prepare_params(params):
    """One-time preprocessing: transpose, fuse biases, zero-pad H -> HP=128.

    PyTorch gate order [i, f, g, o]; each gate is mapped to its own full
    128-lane block so in-kernel gate slices are vreg-aligned.
    """
    w_ih = np.asarray(params["w_ih"], np.float32)    # (4H, INPUT)
    w_hh = np.asarray(params["w_hh"], np.float32)    # (4H, H)
    b = (np.asarray(params["b_ih"], np.float32)
         + np.asarray(params["b_hh"], np.float32))   # (4H,)
    w_fc = np.asarray(params["w_fc"], np.float32)    # (OUT, H)
    b_fc = np.asarray(params["b_fc"], np.float32)    # (OUT,)

    wih_p = np.zeros((INPUT, 4 * HP), np.float32)
    whh_p = np.zeros((HP, 4 * HP), np.float32)       # rows H:HP stay zero
    b_p = np.zeros((1, 4 * HP), np.float32)
    for g in range(4):
        wih_p[:, g * HP:g * HP + H] = w_ih[g * H:(g + 1) * H, :].T
        whh_p[:H, g * HP:g * HP + H] = w_hh[g * H:(g + 1) * H, :].T
        b_p[0, g * HP:g * HP + H] = b[g * H:(g + 1) * H]
    wfc_p = np.zeros((1, HP), np.float32)
    wfc_p[:, :H] = w_fc                              # (1, H) -> padded (1, HP)
    bfc_p = b_fc.reshape(1, OUT)

    return {
        "wih": jnp.asarray(wih_p), "whh": jnp.asarray(whh_p),
        "b": jnp.asarray(b_p), "wfc": jnp.asarray(wfc_p),
        "bfc": jnp.asarray(bfc_p),
    }


@jax.jit
def model_forward(seq, prepped):
    """seq: (T,) or (T, INPUT) float32. Returns shape (OUT,) — out[-1] in PyTorch."""
    x = seq.reshape(T, INPUT).astype(jnp.float32)
    vmem = pl.BlockSpec(memory_space=pltpu.MemorySpace.VMEM)
    out = pl.pallas_call(
        functools.partial(lstm_fc_kernel, hidden_padded=HP, seq_len=T),
        out_shape=jax.ShapeDtypeStruct((1, OUT), jnp.float32),
        in_specs=[vmem] * 6,
        out_specs=vmem,
    )(x, prepped["wih"], prepped["whh"], prepped["b"],
      prepped["wfc"], prepped["bfc"])
    return out.reshape(OUT)


def reference_forward(seq_np, params):
    """Pure-numpy reference of the PyTorch forward (sanity check)."""
    x = np.asarray(seq_np, np.float32).reshape(T, INPUT)
    w_ih = np.asarray(params["w_ih"]); w_hh = np.asarray(params["w_hh"])
    b = np.asarray(params["b_ih"]) + np.asarray(params["b_hh"])
    w_fc = np.asarray(params["w_fc"]); b_fc = np.asarray(params["b_fc"])
    h = np.zeros((H,), np.float32); c = np.zeros((H,), np.float32)
    sig = lambda z: 1.0 / (1.0 + np.exp(-z))
    for t in range(T):
        g = x[t] @ w_ih.T + h @ w_hh.T + b
        i_g, f_g = sig(g[:H]), sig(g[H:2 * H])
        g_g, o_g = np.tanh(g[2 * H:3 * H]), sig(g[3 * H:])
        c = f_g * c + i_g * g_g
        h = o_g * np.tanh(c)
    return h @ w_fc.T + b_fc   # fc on the last timestep -> shape (OUT,)


def init_params(key):
    ks = jax.random.split(key, 6)
    scale = 1.0 / np.sqrt(H)
    u = lambda k, shp: jax.random.uniform(k, shp, jnp.float32, -scale, scale)
    return {
        "w_ih": u(ks[0], (4 * H, INPUT)),
        "w_hh": u(ks[1], (4 * H, H)),
        "b_ih": u(ks[2], (4 * H,)),
        "b_hh": u(ks[3], (4 * H,)),
        "w_fc": u(ks[4], (OUT, H)),
        "b_fc": u(ks[5], (OUT,)),
    }


# TODO(synk): batch=1 per the module spec; batching B sequences (and sharding
# the batch axis across v7x's two TensorCores) is the only way to raise
# utilization further but changes the module's interface.

if __name__ == "__main__":
    key = jax.random.PRNGKey(0)
    pkey, xkey = jax.random.split(key)
    params = init_params(pkey)
    prepped = prepare_params(params)          # one-time, outside the call path
    seq = jax.random.normal(xkey, (T,), jnp.float32)

    out = model_forward(seq, prepped)
    jax.block_until_ready(out)

    ref = reference_forward(np.asarray(seq), params)
    np.testing.assert_allclose(np.asarray(out), ref, rtol=1e-3, atol=1e-3)
    print("KERNEL_OK")
</pallas_src>

<mosaic_0001>
module attributes {stable_mosaic.version = 11 : i64} {
  func.func @lstm_fc_kernel(%arg0: memref<8x1xf32, #tpu.memory_space<vmem>>, %arg1: memref<1x512xf32, #tpu.memory_space<vmem>>, %arg2: memref<128x512xf32, #tpu.memory_space<vmem>>, %arg3: memref<1x512xf32, #tpu.memory_space<vmem>>, %arg4: memref<1x128xf32, #tpu.memory_space<vmem>>, %arg5: memref<1x1xf32, #tpu.memory_space<vmem>>, %arg6: memref<1x1xf32, #tpu.memory_space<vmem>>) attributes {dimension_semantics = [], scalar_prefetch = 0 : i64, scratch_operands = 0 : i64, tpu.core_type = #tpu.core_type<tc>} {
    %c0 = arith.constant 0 : index
    %c0_0 = arith.constant 0 : index
    %0 = vector.load %arg0[%c0, %c0_0] : memref<8x1xf32, #tpu.memory_space<vmem>>, vector<8x1xf32>
    %c0_1 = arith.constant 0 : index
    %c0_2 = arith.constant 0 : index
    %1 = vector.load %arg1[%c0_1, %c0_2] : memref<1x512xf32, #tpu.memory_space<vmem>>, vector<1x512xf32>
    %cst = arith.constant dense<0.000000e+00> : vector<8x512xf32>
    %2 = tpu.matmul %0, %1, %cst {dimension_numbers = #tpu.dot_dimension_numbers<[1], [0], [0], [1], [0, 0, 1, 1], [], []>} : vector<8x1xf32>, vector<1x512xf32>, vector<8x512xf32> -> vector<8x512xf32>
    %c0_3 = arith.constant 0 : index
    %c0_4 = arith.constant 0 : index
    %3 = vector.load %arg3[%c0_3, %c0_4] : memref<1x512xf32, #tpu.memory_space<vmem>>, vector<1x512xf32>
    %4 = vector.broadcast %3 : vector<1x512xf32> to vector<8x512xf32>
    %5 = arith.addf %2, %4 : vector<8x512xf32>
    %cst_5 = arith.constant 0.000000e+00 : f32
    %6 = vector.broadcast %cst_5 : f32 to vector<1x128xf32>
    %cst_6 = arith.constant 0.000000e+00 : f32
    %7 = vector.broadcast %cst_6 : f32 to vector<1x128xf32>
    %c0_7 = arith.constant 0 : index
    %c0_8 = arith.constant 0 : index
    %8 = vector.load %arg2[%c0_7, %c0_8] : memref<128x512xf32, #tpu.memory_space<vmem>>, vector<128x512xf32>
    %cst_9 = arith.constant dense<0.000000e+00> : vector<1x512xf32>
    %9 = tpu.matmul %6, %8, %cst_9 {dimension_numbers = #tpu.dot_dimension_numbers<[1], [0], [0], [1], [0, 0, 1, 1], [], []>} : vector<1x128xf32>, vector<128x512xf32>, vector<1x512xf32> -> vector<1x512xf32>
    %10 = vector.extract_strided_slice %5 {offsets = [0, 0], sizes = [1, 512], strides = [1, 1]} : vector<8x512xf32> to vector<1x512xf32>
    %11 = arith.addf %9, %10 : vector<1x512xf32>
    %12 = vector.extract_strided_slice %11 {offsets = [0, 0], sizes = [1, 128], strides = [1, 1]} : vector<1x512xf32> to vector<1x128xf32>
    %13 = arith.negf %12 : vector<1x128xf32>
    %14 = math.exp %13 : vector<1x128xf32>
    %cst_10 = arith.constant 1.000000e+00 : f32
    %15 = vector.broadcast %cst_10 : f32 to vector<1x128xf32>
    %16 = arith.addf %15, %14 : vector<1x128xf32>
    %17 = arith.divf %15, %16 : vector<1x128xf32>
    %18 = vector.extract_strided_slice %11 {offsets = [0, 128], sizes = [1, 128], strides = [1, 1]} : vector<1x512xf32> to vector<1x128xf32>
    %19 = arith.negf %18 : vector<1x128xf32>
    %20 = math.exp %19 : vector<1x128xf32>
    %cst_11 = arith.constant 1.000000e+00 : f32
    %21 = vector.broadcast %cst_11 : f32 to vector<1x128xf32>
    %22 = arith.addf %21, %20 : vector<1x128xf32>
    %23 = arith.divf %21, %22 : vector<1x128xf32>
    %24 = vector.extract_strided_slice %11 {offsets = [0, 256], sizes = [1, 128], strides = [1, 1]} : vector<1x512xf32> to vector<1x128xf32>
    %25 = math.tanh %24 : vector<1x128xf32>
    %26 = vector.extract_strided_slice %11 {offsets = [0, 384], sizes = [1, 128], strides = [1, 1]} : vector<1x512xf32> to vector<1x128xf32>
    %27 = arith.negf %26 : vector<1x128xf32>
    %28 = math.exp %27 : vector<1x128xf32>
    %cst_12 = arith.constant 1.000000e+00 : f32
    %29 = vector.broadcast %cst_12 : f32 to vector<1x128xf32>
    %30 = arith.addf %29, %28 : vector<1x128xf32>
    %31 = arith.divf %29, %30 : vector<1x128xf32>
    %32 = arith.mulf %23, %7 : vector<1x128xf32>
    %33 = arith.mulf %17, %25 : vector<1x128xf32>
    %34 = arith.addf %32, %33 : vector<1x128xf32>
    %35 = math.tanh %34 : vector<1x128xf32>
    %36 = arith.mulf %31, %35 : vector<1x128xf32>
    %c0_13 = arith.constant 0 : index
    %c0_14 = arith.constant 0 : index
    %37 = vector.load %arg2[%c0_13, %c0_14] : memref<128x512xf32, #tpu.memory_space<vmem>>, vector<128x512xf32>
    %cst_15 = arith.constant dense<0.000000e+00> : vector<1x512xf32>
    %38 = tpu.matmul %36, %37, %cst_15 {dimension_numbers = #tpu.dot_dimension_numbers<[1], [0], [0], [1], [0, 0, 1, 1], [], []>} : vector<1x128xf32>, vector<128x512xf32>, vector<1x512xf32> -> vector<1x512xf32>
    %39 = vector.extract_strided_slice %5 {offsets = [1, 0], sizes = [1, 512], strides = [1, 1]} : vector<8x512xf32> to vector<1x512xf32>
    %40 = arith.addf %38, %39 : vector<1x512xf32>
    %41 = vector.extract_strided_slice %40 {offsets = [0, 0], sizes = [1, 128], strides = [1, 1]} : vector<1x512xf32> to vector<1x128xf32>
    %42 = arith.negf %41 : vector<1x128xf32>
    %43 = math.exp %42 : vector<1x128xf32>
    %cst_16 = arith.constant 1.000000e+00 : f32
    %44 = vector.broadcast %cst_16 : f32 to vector<1x128xf32>
    %45 = arith.addf %44, %43 : vector<1x128xf32>
    %46 = arith.divf %44, %45 : vector<1x128xf32>
    %47 = vector.extract_strided_slice %40 {offsets = [0, 128], sizes = [1, 128], strides = [1, 1]} : vector<1x512xf32> to vector<1x128xf32>
    %48 = arith.negf %47 : vector<1x128xf32>
    %49 = math.exp %48 : vector<1x128xf32>
    %cst_17 = arith.constant 1.000000e+00 : f32
    %50 = vector.broadcast %cst_17 : f32 to vector<1x128xf32>
    %51 = arith.addf %50, %49 : vector<1x128xf32>
    %52 = arith.divf %50, %51 : vector<1x128xf32>
    %53 = vector.extract_strided_slice %40 {offsets = [0, 256], sizes = [1, 128], strides = [1, 1]} : vector<1x512xf32> to vector<1x128xf32>
    %54 = math.tanh %53 : vector<1x128xf32>
    %55 = vector.extract_strided_slice %40 {offsets = [0, 384], sizes = [1, 128], strides = [1, 1]} : vector<1x512xf32> to vector<1x128xf32>
    %56 = arith.negf %55 : vector<1x128xf32>
    %57 = math.exp %56 : vector<1x128xf32>
    %cst_18 = arith.constant 1.000000e+00 : f32
    %58 = vector.broadcast %cst_18 : f32 to vector<1x128xf32>
    %59 = arith.addf %58, %57 : vector<1x128xf32>
    %60 = arith.divf %58, %59 : vector<1x128xf32>
    %61 = arith.mulf %52, %34 : vector<1x128xf32>
    %62 = arith.mulf %46, %54 : vector<1x128xf32>
    %63 = arith.addf %61, %62 : vector<1x128xf32>
    %64 = math.tanh %63 : vector<1x128xf32>
    %65 = arith.mulf %60, %64 : vector<1x128xf32>
    %c0_19 = arith.constant 0 : index
    %c0_20 = arith.constant 0 : index
    %66 = vector.load %arg2[%c0_19, %c0_20] : memref<128x512xf32, #tpu.memory_space<vmem>>, vector<128x512xf32>
    %cst_21 = arith.constant dense<0.000000e+00> : vector<1x512xf32>
    %67 = tpu.matmul %65, %66, %cst_21 {dimension_numbers = #tpu.dot_dimension_numbers<[1], [0], [0], [1], [0, 0, 1, 1], [], []>} : vector<1x128xf32>, vector<128x512xf32>, vector<1x512xf32> -> vector<1x512xf32>
    %68 = vector.extract_strided_slice %5 {offsets = [2, 0], sizes = [1, 512], strides = [1, 1]} : vector<8x512xf32> to vector<1x512xf32>
    %69 = arith.addf %67, %68 : vector<1x512xf32>
    %70 = vector.extract_strided_slice %69 {offsets = [0, 0], sizes = [1, 128], strides = [1, 1]} : vector<1x512xf32> to vector<1x128xf32>
    %71 = arith.negf %70 : vector<1x128xf32>
    %72 = math.exp %71 : vector<1x128xf32>
    %cst_22 = arith.constant 1.000000e+00 : f32
    %73 = vector.broadcast %cst_22 : f32 to vector<1x128xf32>
    %74 = arith.addf %73, %72 : vector<1x128xf32>
    %75 = arith.divf %73, %74 : vector<1x128xf32>
    %76 = vector.extract_strided_slice %69 {offsets = [0, 128], sizes = [1, 128], strides = [1, 1]} : vector<1x512xf32> to vector<1x128xf32>
    %77 = arith.negf %76 : vector<1x128xf32>
    %78 = math.exp %77 : vector<1x128xf32>
    %cst_23 = arith.constant 1.000000e+00 : f32
    %79 = vector.broadcast %cst_23 : f32 to vector<1x128xf32>
    %80 = arith.addf %79, %78 : vector<1x128xf32>
    %81 = arith.divf %79, %80 : vector<1x128xf32>
    %82 = vector.extract_strided_slice %69 {offsets = [0, 256], sizes = [1, 128], strides = [1, 1]} : vector<1x512xf32> to vector<1x128xf32>
    %83 = math.tanh %82 : vector<1x128xf32>
    %84 = vector.extract_strided_slice %69 {offsets = [0, 384], sizes = [1, 128], strides = [1, 1]} : vector<1x512xf32> to vector<1x128xf32>
    %85 = arith.negf %84 : vector<1x128xf32>
    %86 = math.exp %85 : vector<1x128xf32>
    %cst_24 = arith.constant 1.000000e+00 : f32
    %87 = vector.broadcast %cst_24 : f32 to vector<1x128xf32>
    %88 = arith.addf %87, %86 : vector<1x128xf32>
    %89 = arith.divf %87, %88 : vector<1x128xf32>
    %90 = arith.mulf %81, %63 : vector<1x128xf32>
    %91 = arith.mulf %75, %83 : vector<1x128xf32>
    %92 = arith.addf %90, %91 : vector<1x128xf32>
    %93 = math.tanh %92 : vector<1x128xf32>
    %94 = arith.mulf %89, %93 : vector<1x128xf32>
    %c0_25 = arith.constant 0 : index
    %c0_26 = arith.constant 0 : index
    %95 = vector.load %arg2[%c0_25, %c0_26] : memref<128x512xf32, #tpu.memory_space<vmem>>, vector<128x512xf32>
    %cst_27 = arith.constant dense<0.000000e+00> : vector<1x512xf32>
    %96 = tpu.matmul %94, %95, %cst_27 {dimension_numbers = #tpu.dot_dimension_numbers<[1], [0], [0], [1], [0, 0, 1, 1], [], []>} : vector<1x128xf32>, vector<128x512xf32>, vector<1x512xf32> -> vector<1x512xf32>
    %97 = vector.extract_strided_slice %5 {offsets = [3, 0], sizes = [1, 512], strides = [1, 1]} : vector<8x512xf32> to vector<1x512xf32>
    %98 = arith.addf %96, %97 : vector<1x512xf32>
    %99 = vector.extract_strided_slice %98 {offsets = [0, 0], sizes = [1, 128], strides = [1, 1]} : vector<1x512xf32> to vector<1x128xf32>
    %100 = arith.negf %99 : vector<1x128xf32>
    %101 = math.exp %100 : vector<1x128xf32>
    %cst_28 = arith.constant 1.000000e+00 : f32
    %102 = vector.broadcast %cst_28 : f32 to vector<1x128xf32>
    %103 = arith.addf %102, %101 : vector<1x128xf32>
    %104 = arith.divf %102, %103 : vector<1x128xf32>
    %105 = vector.extract_strided_slice %98 {offsets = [0, 128], sizes = [1, 128], strides = [1, 1]} : vector<1x512xf32> to vector<1x128xf32>
    %106 = arith.negf %105 : vector<1x128xf32>
    %107 = math.exp %106 : vector<1x128xf32>
    %cst_29 = arith.constant 1.000000e+00 : f32
    %108 = vector.broadcast %cst_29 : f32 to vector<1x128xf32>
    %109 = arith.addf %108, %107 : vector<1x128xf32>
    %110 = arith.divf %108, %109 : vector<1x128xf32>
    %111 = vector.extract_strided_slice %98 {offsets = [0, 256], sizes = [1, 128], strides = [1, 1]} : vector<1x512xf32> to vector<1x128xf32>
    %112 = math.tanh %111 : vector<1x128xf32>
    %113 = vector.extract_strided_slice %98 {offsets = [0, 384], sizes = [1, 128], strides = [1, 1]} : vector<1x512xf32> to vector<1x128xf32>
    %114 = arith.negf %113 : vector<1x128xf32>
    %115 = math.exp %114 : vector<1x128xf32>
    %cst_30 = arith.constant 1.000000e+00 : f32
    %116 = vector.broadcast %cst_30 : f32 to vector<1x128xf32>
    %117 = arith.addf %116, %115 : vector<1x128xf32>
    %118 = arith.divf %116, %117 : vector<1x128xf32>
    %119 = arith.mulf %110, %92 : vector<1x128xf32>
    %120 = arith.mulf %104, %112 : vector<1x128xf32>
    %121 = arith.addf %119, %120 : vector<1x128xf32>
    %122 = math.tanh %121 : vector<1x128xf32>
    %123 = arith.mulf %118, %122 : vector<1x128xf32>
    %c0_31 = arith.constant 0 : index
    %c0_32 = arith.constant 0 : index
    %124 = vector.load %arg2[%c0_31, %c0_32] : memref<128x512xf32, #tpu.memory_space<vmem>>, vector<128x512xf32>
    %cst_33 = arith.constant dense<0.000000e+00> : vector<1x512xf32>
    %125 = tpu.matmul %123, %124, %cst_33 {dimension_numbers = #tpu.dot_dimension_numbers<[1], [0], [0], [1], [0, 0, 1, 1], [], []>} : vector<1x128xf32>, vector<128x512xf32>, vector<1x512xf32> -> vector<1x512xf32>
    %126 = vector.extract_strided_slice %5 {offsets = [4, 0], sizes = [1, 512], strides = [1, 1]} : vector<8x512xf32> to vector<1x512xf32>
    %127 = arith.addf %125, %126 : vector<1x512xf32>
    %128 = vector.extract_strided_slice %127 {offsets = [0, 0], sizes = [1, 128], strides = [1, 1]} : vector<1x512xf32> to vector<1x128xf32>
    %129 = arith.negf %128 : vector<1x128xf32>
    %130 = math.exp %129 : vector<1x128xf32>
    %cst_34 = arith.constant 1.000000e+00 : f32
    %131 = vector.broadcast %cst_34 : f32 to vector<1x128xf32>
    %132 = arith.addf %131, %130 : vector<1x128xf32>
    %133 = arith.divf %131, %132 : vector<1x128xf32>
    %134 = vector.extract_strided_slice %127 {offsets = [0, 128], sizes = [1, 128], strides = [1, 1]} : vector<1x512xf32> to vector<1x128xf32>
    %135 = arith.negf %134 : vector<1x128xf32>
    %136 = math.exp %135 : vector<1x128xf32>
    %cst_35 = arith.constant 1.000000e+00 : f32
    %137 = vector.broadcast %cst_35 : f32 to vector<1x128xf32>
    %138 = arith.addf %137, %136 : vector<1x128xf32>
    %139 = arith.divf %137, %138 : vector<1x128xf32>
    %140 = vector.extract_strided_slice %127 {offsets = [0, 256], sizes = [1, 128], strides = [1, 1]} : vector<1x512xf32> to vector<1x128xf32>
    %141 = math.tanh %140 : vector<1x128xf32>
    %142 = vector.extract_strided_slice %127 {offsets = [0, 384], sizes = [1, 128], strides = [1, 1]} : vector<1x512xf32> to vector<1x128xf32>
    %143 = arith.negf %142 : vector<1x128xf32>
    %144 = math.exp %143 : vector<1x128xf32>
    %cst_36 = arith.constant 1.000000e+00 : f32
    %145 = vector.broadcast %cst_36 : f32 to vector<1x128xf32>
    %146 = arith.addf %145, %144 : vector<1x128xf32>
    %147 = arith.divf %145, %146 : vector<1x128xf32>
    %148 = arith.mulf %139, %121 : vector<1x128xf32>
    %149 = arith.mulf %133, %141 : vector<1x128xf32>
    %150 = arith.addf %148, %149 : vector<1x128xf32>
    %151 = math.tanh %150 : vector<1x128xf32>
    %152 = arith.mulf %147, %151 : vector<1x128xf32>
    %c0_37 = arith.constant 0 : index
    %c0_38 = arith.constant 0 : index
    %153 = vector.load %arg2[%c0_37, %c0_38] : memref<128x512xf32, #tpu.memory_space<vmem>>, vector<128x512xf32>
    %cst_39 = arith.constant dense<0.000000e+00> : vector<1x512xf32>
    %154 = tpu.matmul %152, %153, %cst_39 {dimension_numbers = #tpu.dot_dimension_numbers<[1], [0], [0], [1], [0, 0, 1, 1], [], []>} : vector<1x128xf32>, vector<128x512xf32>, vector<1x512xf32> -> vector<1x512xf32>
    %155 = vector.extract_strided_slice %5 {offsets = [5, 0], sizes = [1, 512], strides = [1, 1]} : vector<8x512xf32> to vector<1x512xf32>
    %156 = arith.addf %154, %155 : vector<1x512xf32>
    %157 = vector.extract_strided_slice %156 {offsets = [0, 0], sizes = [1, 128], strides = [1, 1]} : vector<1x512xf32> to vector<1x128xf32>
    %158 = arith.negf %157 : vector<1x128xf32>
    %159 = math.exp %158 : vector<1x128xf32>
    %cst_40 = arith.constant 1.000000e+00 : f32
    %160 = vector.broadcast %cst_40 : f32 to vector<1x128xf32>
    %161 = arith.addf %160, %159 : vector<1x128xf32>
    %162 = arith.divf %160, %161 : vector<1x128xf32>
    %163 = vector.extract_strided_slice %156 {offsets = [0, 128], sizes = [1, 128], strides = [1, 1]} : vector<1x512xf32> to vector<1x128xf32>
    %164 = arith.negf %163 : vector<1x128xf32>
    %165 = math.exp %164 : vector<1x128xf32>
    %cst_41 = arith.constant 1.000000e+00 : f32
    %166 = vector.broadcast %cst_41 : f32 to vector<1x128xf32>
    %167 = arith.addf %166, %165 : vector<1x128xf32>
    %168 = arith.divf %166, %167 : vector<1x128xf32>
    %169 = vector.extract_strided_slice %156 {offsets = [0, 256], sizes = [1, 128], strides = [1, 1]} : vector<1x512xf32> to vector<1x128xf32>
    %170 = math.tanh %169 : vector<1x128xf32>
    %171 = vector.extract_strided_slice %156 {offsets = [0, 384], sizes = [1, 128], strides = [1, 1]} : vector<1x512xf32> to vector<1x128xf32>
    %172 = arith.negf %171 : vector<1x128xf32>
    %173 = math.exp %172 : vector<1x128xf32>
    %cst_42 = arith.constant 1.000000e+00 : f32
    %174 = vector.broadcast %cst_42 : f32 to vector<1x128xf32>
    %175 = arith.addf %174, %173 : vector<1x128xf32>
    %176 = arith.divf %174, %175 : vector<1x128xf32>
    %177 = arith.mulf %168, %150 : vector<1x128xf32>
    %178 = arith.mulf %162, %170 : vector<1x128xf32>
    %179 = arith.addf %177, %178 : vector<1x128xf32>
    %180 = math.tanh %179 : vector<1x128xf32>
    %181 = arith.mulf %176, %180 : vector<1x128xf32>
    %c0_43 = arith.constant 0 : index
    %c0_44 = arith.constant 0 : index
    %182 = vector.load %arg2[%c0_43, %c0_44] : memref<128x512xf32, #tpu.memory_space<vmem>>, vector<128x512xf32>
    %cst_45 = arith.constant dense<0.000000e+00> : vector<1x512xf32>
    %183 = tpu.matmul %181, %182, %cst_45 {dimension_numbers = #tpu.dot_dimension_numbers<[1], [0], [0], [1], [0, 0, 1, 1], [], []>} : vector<1x128xf32>, vector<128x512xf32>, vector<1x512xf32> -> vector<1x512xf32>
    %184 = vector.extract_strided_slice %5 {offsets = [6, 0], sizes = [1, 512], strides = [1, 1]} : vector<8x512xf32> to vector<1x512xf32>
    %185 = arith.addf %183, %184 : vector<1x512xf32>
    %186 = vector.extract_strided_slice %185 {offsets = [0, 0], sizes = [1, 128], strides = [1, 1]} : vector<1x512xf32> to vector<1x128xf32>
    %187 = arith.negf %186 : vector<1x128xf32>
    %188 = math.exp %187 : vector<1x128xf32>
    %cst_46 = arith.constant 1.000000e+00 : f32
    %189 = vector.broadcast %cst_46 : f32 to vector<1x128xf32>
    %190 = arith.addf %189, %188 : vector<1x128xf32>
    %191 = arith.divf %189, %190 : vector<1x128xf32>
    %192 = vector.extract_strided_slice %185 {offsets = [0, 128], sizes = [1, 128], strides = [1, 1]} : vector<1x512xf32> to vector<1x128xf32>
    %193 = arith.negf %192 : vector<1x128xf32>
    %194 = math.exp %193 : vector<1x128xf32>
    %cst_47 = arith.constant 1.000000e+00 : f32
    %195 = vector.broadcast %cst_47 : f32 to vector<1x128xf32>
    %196 = arith.addf %195, %194 : vector<1x128xf32>
    %197 = arith.divf %195, %196 : vector<1x128xf32>
    %198 = vector.extract_strided_slice %185 {offsets = [0, 256], sizes = [1, 128], strides = [1, 1]} : vector<1x512xf32> to vector<1x128xf32>
    %199 = math.tanh %198 : vector<1x128xf32>
    %200 = vector.extract_strided_slice %185 {offsets = [0, 384], sizes = [1, 128], strides = [1, 1]} : vector<1x512xf32> to vector<1x128xf32>
    %201 = arith.negf %200 : vector<1x128xf32>
    %202 = math.exp %201 : vector<1x128xf32>
    %cst_48 = arith.constant 1.000000e+00 : f32
    %203 = vector.broadcast %cst_48 : f32 to vector<1x128xf32>
    %204 = arith.addf %203, %202 : vector<1x128xf32>
    %205 = arith.divf %203, %204 : vector<1x128xf32>
    %206 = arith.mulf %197, %179 : vector<1x128xf32>
    %207 = arith.mulf %191, %199 : vector<1x128xf32>
    %208 = arith.addf %206, %207 : vector<1x128xf32>
    %209 = math.tanh %208 : vector<1x128xf32>
    %210 = arith.mulf %205, %209 : vector<1x128xf32>
    %c0_49 = arith.constant 0 : index
    %c0_50 = arith.constant 0 : index
    %211 = vector.load %arg2[%c0_49, %c0_50] : memref<128x512xf32, #tpu.memory_space<vmem>>, vector<128x512xf32>
    %cst_51 = arith.constant dense<0.000000e+00> : vector<1x512xf32>
    %212 = tpu.matmul %210, %211, %cst_51 {dimension_numbers = #tpu.dot_dimension_numbers<[1], [0], [0], [1], [0, 0, 1, 1], [], []>} : vector<1x128xf32>, vector<128x512xf32>, vector<1x512xf32> -> vector<1x512xf32>
    %213 = vector.extract_strided_slice %5 {offsets = [7, 0], sizes = [1, 512], strides = [1, 1]} : vector<8x512xf32> to vector<1x512xf32>
    %214 = arith.addf %212, %213 : vector<1x512xf32>
    %215 = vector.extract_strided_slice %214 {offsets = [0, 0], sizes = [1, 128], strides = [1, 1]} : vector<1x512xf32> to vector<1x128xf32>
    %216 = arith.negf %215 : vector<1x128xf32>
    %217 = math.exp %216 : vector<1x128xf32>
    %cst_52 = arith.constant 1.000000e+00 : f32
    %218 = vector.broadcast %cst_52 : f32 to vector<1x128xf32>
    %219 = arith.addf %218, %217 : vector<1x128xf32>
    %220 = arith.divf %218, %219 : vector<1x128xf32>
    %221 = vector.extract_strided_slice %214 {offsets = [0, 128], sizes = [1, 128], strides = [1, 1]} : vector<1x512xf32> to vector<1x128xf32>
    %222 = arith.negf %221 : vector<1x128xf32>
    %223 = math.exp %222 : vector<1x128xf32>
    %cst_53 = arith.constant 1.000000e+00 : f32
    %224 = vector.broadcast %cst_53 : f32 to vector<1x128xf32>
    %225 = arith.addf %224, %223 : vector<1x128xf32>
    %226 = arith.divf %224, %225 : vector<1x128xf32>
    %227 = vector.extract_strided_slice %214 {offsets = [0, 256], sizes = [1, 128], strides = [1, 1]} : vector<1x512xf32> to vector<1x128xf32>
    %228 = math.tanh %227 : vector<1x128xf32>
    %229 = vector.extract_strided_slice %214 {offsets = [0, 384], sizes = [1, 128], strides = [1, 1]} : vector<1x512xf32> to vector<1x128xf32>
    %230 = arith.negf %229 : vector<1x128xf32>
    %231 = math.exp %230 : vector<1x128xf32>
    %cst_54 = arith.constant 1.000000e+00 : f32
    %232 = vector.broadcast %cst_54 : f32 to vector<1x128xf32>
    %233 = arith.addf %232, %231 : vector<1x128xf32>
    %234 = arith.divf %232, %233 : vector<1x128xf32>
    %235 = arith.mulf %226, %208 : vector<1x128xf32>
    %236 = arith.mulf %220, %228 : vector<1x128xf32>
    %237 = arith.addf %235, %236 : vector<1x128xf32>
    %238 = math.tanh %237 : vector<1x128xf32>
    %239 = arith.mulf %234, %238 : vector<1x128xf32>
    %c0_55 = arith.constant 0 : index
    %c0_56 = arith.constant 0 : index
    %240 = vector.load %arg4[%c0_55, %c0_56] : memref<1x128xf32, #tpu.memory_space<vmem>>, vector<1x128xf32>
    %241 = arith.mulf %239, %240 : vector<1x128xf32>
    %cst_57 = arith.constant dense<0.000000e+00> : vector<1xf32>
    %242 = vector.multi_reduction <add>, %241, %cst_57 [1] : vector<1x128xf32> to vector<1xf32>
    %243 = vector.shape_cast %242 : vector<1xf32> to vector<1x1xf32>
    %c0_58 = arith.constant 0 : index
    %c0_59 = arith.constant 0 : index
    %244 = vector.load %arg5[%c0_58, %c0_59] : memref<1x1xf32, #tpu.memory_space<vmem>>, vector<1x1xf32>
    %245 = arith.addf %243, %244 : vector<1x1xf32>
    %c0_60 = arith.constant 0 : index
    %c0_61 = arith.constant 0 : index
    %246 = vector.load %arg6[%c0_60, %c0_61] : memref<1x1xf32, #tpu.memory_space<vmem>>, vector<1x1xf32>
    tpu.vector_store %arg6[%c0_60, %c0_61], %245 {strides = array<i32>} : memref<1x1xf32, #tpu.memory_space<vmem>>, vector<1x1xf32>,
    return
  }
}

</mosaic_0001>

<llo_original>
// kernel: model_forward.1
$region0: #{model_forward.1}
  #allocation0 [shape = 'u32[]', space=smem, size = 0x4, offset = 0x4, fixed_abs, tag = 'smem constant byte address 0x4 - core index']
  #allocation1 [shape = 'u32[72,128]{1,0:T(1,128)}', space=vmem, size = 0x9000, scoped, tag = 'internal scratch']
  #allocation2 [shape = 'f32[1,1]{1,0:T(1,128)S(1)}', space=vmem, size = 0x200, scoped, tag = 'scoped memory for model_forward.1']
  %s0 = inlined_call_operand.vmem [shape: f32[8,1], index: 0, kind: input, shape index: {}]
  %s1 = inlined_call_operand.vmem [shape: f32[1,512], index: 1, kind: input, shape index: {}]
  %s2 = inlined_call_operand.hbm [shape: f32[128,512], index: 2, kind: input, shape index: {}]
  %s3 = inlined_call_operand.vmem [shape: f32[1,512], index: 3, kind: input, shape index: {}]
  %s4 = inlined_call_operand.vmem [shape: f32[1,128], index: 4, kind: input, shape index: {}]
  %s5 = inlined_call_operand.<no memory space> [shape: f32[1,1], index: 5, kind: input, shape index: {}]
  %s6 = inlined_call_operand.hbm [shape: f32[1,1], index: 6, kind: output, shape index: {}]
  %s7 = sld [smem:[#allocation0]]
  $region38: #{model_forward.1} parent=0
    _
  %s9 = ssub.s32 1, %s7
  %s10 = scalar_select 0, %s9, %s7
  %v11 = vstv %s5
  %12 = vst [vmem:[#allocation2] sm:$0x1] %v11
  $region1: #{model_forward.1} parent=0
    #allocation3 [shape = 'u8[262144]{0}', space=vmem, size = 0x40000, scoped, tag = 'input window, operand 2, single buffered']
    #allocation4 [shape = 's32[1]{0}', space=sflag, size = 0x4, scoped, tag = 'scoped memory for model_forward.1']
    #allocation5 [shape = 's32[1]{0}', space=sflag, size = 0x4, scoped, tag = 'scoped memory for model_forward.1']
    #allocation6 [shape = 'u8[512]{0}', space=vmem, size = 0x400, scoped, tag = 'output window, operand 0, single buffered']
    %13 = vsyncpa [#allocation4], 0
    %14 = vsyncpa [#allocation5], 0
    // Predicated region
    $region2: #{model_forward.1} parent=1 // pred_check
      _
    $region3: #{model_forward.1} parent=1 // pred_check_branch
      %16 = sbr.rel (0) target = $region5
    $region4: #{model_forward.1} parent=1 // pred_region
      _
    $region5: #{model_forward.1} parent=1 // pred_fallthru
      _
    // Predicated region
    $region6: #{model_forward.1} parent=1 // pred_check
      _
    $region7: #{model_forward.1} parent=1 // pred_check_branch
      %18 = sbr.rel (0) target = $region9
    $region8: #{model_forward.1} parent=1 // pred_region
      _
    $region9: #{model_forward.1} parent=1 // pred_fallthru
      _
    // Predicated region
    $region10: #{model_forward.1} parent=1 // pred_check
      _
    $region11: #{model_forward.1} parent=1 // pred_check_branch
      %20 = sbr.rel (0) target = $region13
    $region12: #{model_forward.1} parent=1 // pred_region
      %22 = vsyncadd [#allocation4], 0
      %s23 = sshll.u32 %s2, 4
      %s24 = int_to_ptr.hbm [resolvable:$true] %s23
      %s25 = sshll.u32 [#allocation3], 4
      %s26 = int_to_ptr.vmem [resolvable:$true] %s25
      %31 = dma.hbm_to_vmem [thread:$0]  %s24, 8192, %s26, [#allocation4], 512, 512, 32
    $region13: #{model_forward.1} parent=1 // pred_fallthru
      _
    // Predicated region
    $region14: #{model_forward.1} parent=1 // pred_check
      _
    $region15: #{model_forward.1} parent=1 // pred_check_branch
      %33 = sbr.rel (0) target = $region17
    $region16: #{model_forward.1} parent=1 // pred_region
      _
    $region17: #{model_forward.1} parent=1 // pred_fallthru
      _
    // Predicated region
    $region18: #{model_forward.1} parent=1 // pred_check
      _
    $region19: #{model_forward.1} parent=1 // pred_check_branch
      %35 = sbr.rel (0) target = $region21
    $region20: #{model_forward.1} parent=1 // pred_region
      _
    $region21: #{model_forward.1} parent=1 // pred_fallthru
      _
    // Predicated region
    $region22: #{model_forward.1} parent=1 // pred_check
      _
    $region23: #{model_forward.1} parent=1 // pred_check_branch
      %37 = sbr.rel (0) target = $region25
    $region24: #{model_forward.1} parent=1 // pred_region
      _
    $region25: #{model_forward.1} parent=1 // pred_fallthru
      _
    // Predicated region
    $region26: #{model_forward.1} parent=1 // pred_check
      _
    $region27: #{model_forward.1} parent=1 // pred_check_branch
      %39 = sbr.rel (0) target = $region29
    $region28: #{model_forward.1} parent=1 // pred_region
      %41 = dma.done [#allocation4], 8192
    $region29: #{model_forward.1} parent=1 // pred_fallthru
      _
    %v42 = vld [vmem:[%s0] sm:$0xff]
    %v43 = vld [vmem:[%s1] sm:$0xf]
    %v44 = vld [vmem:[%s3] sm:$0xf]
    %v46 = vperm.slane %v44, 0
    %v47 = vperm.slane %v44, 1
    %v48 = vperm.slane %v44, 2
    %v49 = vperm.slane %v44, 3
    %v55 = vperm.slane %v43, 0
    %v56 = vperm.slane %v43, 1
    %v57 = vperm.slane %v43, 2
    %v58 = vperm.slane %v43, 3
    %vm59 = vcmask 7168
    %v61 = vsel %vm59, %v42, 0
    %vm63 = vcmask 1040384
    %v64 = vsel %vm63, %v55, 0
    %v66 = vsel %vm63, %v56, 0
    %v68 = vsel %vm63, %v57, 0
    %v70 = vsel %vm63, %v58, 0
    %72 = vmatpush.msra.mxu0 0.0
    %73 = vmatpush.msra.mxu0 0.0
    %74 = vmatpush.msra.mxu0 0.0
    %75 = vmatpush.msra.mxu0 0.0
    %76 = vmatpush.msra.mxu0 0.0
    %77 = vmatpush.msra.mxu0 0.0
    %78 = vmatpush.msra.mxu0 0.0
    %79 = vmatpush.msra.mxu0 0.0
    %80 = vmatpush.msra.mxu0 0.0
    %81 = vmatpush.msra.mxu0 0.0
    %82 = vmatpush.msra.mxu0 0.0
    %83 = vmatpush.msra.mxu0 0.0
    %84 = vmatpush.msra.mxu0 0.0
    %85 = vmatpush.msra.mxu0 0.0
    %86 = vmatpush.msra.mxu0 0.0
    %87 = vmatpush.msra.mxu0 %v64
    %88 = vmatmul.f32.gmra.mxu0 %v61
    %v89 = vpop.f32.mrf.mxu0
    %v90 = vadd.f32 %v46, %v89
    %91 = vdwg.mxu0
    %92 = vmatpush.msra.mxu0 0.0
    %93 = vmatpush.msra.mxu0 0.0
    %94 = vmatpush.msra.mxu0 0.0
    %95 = vmatpush.msra.mxu0 0.0
    %96 = vmatpush.msra.mxu0 0.0
    %97 = vmatpush.msra.mxu0 0.0
    %98 = vmatpush.msra.mxu0 0.0
    %99 = vmatpush.msra.mxu0 0.0
    %100 = vmatpush.msra.mxu0 0.0
    %101 = vmatpush.msra.mxu0 0.0
    %102 = vmatpush.msra.mxu0 0.0
    %103 = vmatpush.msra.mxu0 0.0
    %104 = vmatpush.msra.mxu0 0.0
    %105 = vmatpush.msra.mxu0 0.0
    %106 = vmatpush.msra.mxu0 0.0
    %107 = vmatpush.msra.mxu0 %v66
    %108 = vmatmul.f32.gmra.mxu0 %v61
    %v109 = vpop.f32.mrf.mxu0
    %v110 = vadd.f32 %v47, %v109
    %111 = vdwg.mxu0
    %112 = vmatpush.msra.mxu0 0.0
    %113 = vmatpush.msra.mxu0 0.0
    %114 = vmatpush.msra.mxu0 0.0
    %115 = vmatpush.msra.mxu0 0.0
    %116 = vmatpush.msra.mxu0 0.0
    %117 = vmatpush.msra.mxu0 0.0
    %118 = vmatpush.msra.mxu0 0.0
    %119 = vmatpush.msra.mxu0 0.0
    %120 = vmatpush.msra.mxu0 0.0
    %121 = vmatpush.msra.mxu0 0.0
    %122 = vmatpush.msra.mxu0 0.0
    %123 = vmatpush.msra.mxu0 0.0
    %124 = vmatpush.msra.mxu0 0.0
    %125 = vmatpush.msra.mxu0 0.0
    %126 = vmatpush.msra.mxu0 0.0
    %127 = vmatpush.msra.mxu0 %v68
    %128 = vmatmul.f32.gmra.mxu0 %v61
    %v129 = vpop.f32.mrf.mxu0
    %v130 = vadd.f32 %v48, %v129
    %131 = vdwg.mxu0
    %132 = vmatpush.msra.mxu0 0.0
    %133 = vmatpush.msra.mxu0 0.0
    %134 = vmatpush.msra.mxu0 0.0
    %135 = vmatpush.msra.mxu0 0.0
    %136 = vmatpush.msra.mxu0 0.0
    %137 = vmatpush.msra.mxu0 0.0
    %138 = vmatpush.msra.mxu0 0.0
    %139 = vmatpush.msra.mxu0 0.0
    %140 = vmatpush.msra.mxu0 0.0
    %141 = vmatpush.msra.mxu0 0.0
    %142 = vmatpush.msra.mxu0 0.0
    %143 = vmatpush.msra.mxu0 0.0
    %144 = vmatpush.msra.mxu0 0.0
    %145 = vmatpush.msra.mxu0 0.0
    %146 = vmatpush.msra.mxu0 0.0
    %147 = vmatpush.msra.mxu0 %v70
    %148 = vmatmul.f32.gmra.mxu0 %v61
    %v149 = vpop.f32.mrf.mxu0
    %v150 = vadd.f32 %v49, %v149
    %151 = vdwg.mxu0
    %v152 = vld [vmem:[#allocation3] sm:$0xff]
    %v153 = vld [vmem:[#allocation3 + $0x8] sm:$0xff]
    %v154 = vld [vmem:[#allocation3 + $0x10] sm:$0xff]
    %v155 = vld [vmem:[#allocation3 + $0x18] sm:$0xff]
    %v156 = vld [vmem:[#allocation3 + $0x20] sm:$0xff]
    %v157 = vld [vmem:[#allocation3 + $0x28] sm:$0xff]
    %v158 = vld [vmem:[#allocation3 + $0x30] sm:$0xff]
    %v159 = vld [vmem:[#allocation3 + $0x38] sm:$0xff]
    %v160 = vld [vmem:[#allocation3 + $0x40] sm:$0xff]
    %v161 = vld [vmem:[#allocation3 + $0x48] sm:$0xff]
    %v162 = vld [vmem:[#allocation3 + $0x50] sm:$0xff]
    %v163 = vld [vmem:[#allocation3 + $0x58] sm:$0xff]
    %v164 = vld [vmem:[#allocation3 + $0x60] sm:$0xff]
    %v165 = vld [vmem:[#allocation3 + $0x68] sm:$0xff]
    %v166 = vld [vmem:[#allocation3 + $0x70] sm:$0xff]
    %v167 = vld [vmem:[#allocation3 + $0x78] sm:$0xff]
    %v168 = vld [vmem:[#allocation3 + $0x80] sm:$0xff]
    %v169 = vld [vmem:[#allocation3 + $0x88] sm:$0xff]
    %v170 = vld [vmem:[#allocation3 + $0x90] sm:$0xff]
    %v171 = vld [vmem:[#allocation3 + $0x98] sm:$0xff]
    %v172 = vld [vmem:[#allocation3 + $0xa0] sm:$0xff]
    %v173 = vld [vmem:[#allocation3 + $0xa8] sm:$0xff]
    %v174 = vld [vmem:[#allocation3 + $0xb0] sm:$0xff]
    %v175 = vld [vmem:[#allocation3 + $0xb8] sm:$0xff]
    %v176 = vld [vmem:[#allocation3 + $0xc0] sm:$0xff]
    %v177 = vld [vmem:[#allocation3 + $0xc8] sm:$0xff]
    %v178 = vld [vmem:[#allocation3 + $0xd0] sm:$0xff]
    %v179 = vld [vmem:[#allocation3 + $0xd8] sm:$0xff]
    %v180 = vld [vmem:[#allocation3 + $0xe0] sm:$0xff]
    %v181 = vld [vmem:[#allocation3 + $0xe8] sm:$0xff]
    %v182 = vld [vmem:[#allocation3 + $0xf0] sm:$0xff]
    %v183 = vld [vmem:[#allocation3 + $0xf8] sm:$0xff]
    %v184 = vld [vmem:[#allocation3 + $0x100] sm:$0xff]
    %v185 = vld [vmem:[#allocation3 + $0x108] sm:$0xff]
    %v186 = vld [vmem:[#allocation3 + $0x110] sm:$0xff]
    %v187 = vld [vmem:[#allocation3 + $0x118] sm:$0xff]
    %v188 = vld [vmem:[#allocation3 + $0x120] sm:$0xff]
    %v189 = vld [vmem:[#allocation3 + $0x128] sm:$0xff]
    %v190 = vld [vmem:[#allocation3 + $0x130] sm:$0xff]
    %v191 = vld [vmem:[#allocation3 + $0x138] sm:$0xff]
    %v192 = vld [vmem:[#allocation3 + $0x140] sm:$0xff]
    %v193 = vld [vmem:[#allocation3 + $0x148] sm:$0xff]
    %v194 = vld [vmem:[#allocation3 + $0x150] sm:$0xff]
    %v195 = vld [vmem:[#allocation3 + $0x158] sm:$0xff]
    %v196 = vld [vmem:[#allocation3 + $0x160] sm:$0xff]
    %v197 = vld [vmem:[#allocation3 + $0x168] sm:$0xff]
    %v198 = vld [vmem:[#allocation3 + $0x170] sm:$0xff]
    %v199 = vld [vmem:[#allocation3 + $0x178] sm:$0xff]
    %v200 = vld [vmem:[#allocation3 + $0x180] sm:$0xff]
    %v201 = vld [vmem:[#allocation3 + $0x188] sm:$0xff]
    %v202 = vld [vmem:[#allocation3 + $0x190] sm:$0xff]
    %v203 = vld [vmem:[#allocation3 + $0x198] sm:$0xff]
    %v204 = vld [vmem:[#allocation3 + $0x1a0] sm:$0xff]
    %v205 = vld [vmem:[#allocation3 + $0x1a8] sm:$0xff]
    %v206 = vld [vmem:[#allocation3 + $0x1b0] sm:$0xff]
    %v207 = vld [vmem:[#allocation3 + $0x1b8] sm:$0xff]
    %v208 = vld [vmem:[#allocation3 + $0x1c0] sm:$0xff]
    %v209 = vld [vmem:[#allocation3 + $0x1c8] sm:$0xff]
    %v210 = vld [vmem:[#allocation3 + $0x1d0] sm:$0xff]
    %v211 = vld [vmem:[#allocation3 + $0x1d8] sm:$0xff]
    %v212 = vld [vmem:[#allocation3 + $0x1e0] sm:$0xff]
    %v213 = vld [vmem:[#allocation3 + $0x1e8] sm:$0xff]
    %v214 = vld [vmem:[#allocation3 + $0x1f0] sm:$0xff]
    %v215 = vld [vmem:[#allocation3 + $0x1f8] sm:$0xff]
    %216 = vmatpush.msra.mxu0 %v212
    %217 = vmatpush.msra.mxu0 %v208
    %218 = vmatpush.msra.mxu0 %v204
    %219 = vmatpush.msra.mxu0 %v200
    %220 = vmatpush.msra.mxu0 %v196
    %221 = vmatpush.msra.mxu0 %v192
    %222 = vmatpush.msra.mxu0 %v188
    %223 = vmatpush.msra.mxu0 %v184
    %224 = vmatpush.msra.mxu0 %v180
    %225 = vmatpush.msra.mxu0 %v176
    %226 = vmatpush.msra.mxu0 %v172
    %227 = vmatpush.msra.mxu0 %v168
    %228 = vmatpush.msra.mxu0 %v164
    %229 = vmatpush.msra.mxu0 %v160
    %230 = vmatpush.msra.mxu0 %v156
    %231 = vmatpush.msra.mxu0 %v152
    %232 = vmatmul.f32.gmra.mxu0 0.0
    %v233 = vpop.f32.mrf.mxu0
    %v234 = vadd.f32 %v90, %v233
    %235 = vdwg.mxu0
    %236 = vmatpush.msra.mxu0 %v213
    %237 = vmatpush.msra.mxu0 %v209
    %238 = vmatpush.msra.mxu0 %v205
    %239 = vmatpush.msra.mxu0 %v201
    %240 = vmatpush.msra.mxu0 %v197
    %241 = vmatpush.msra.mxu0 %v193
    %242 = vmatpush.msra.mxu0 %v189
    %243 = vmatpush.msra.mxu0 %v185
    %244 = vmatpush.msra.mxu0 %v181
    %245 = vmatpush.msra.mxu0 %v177
    %246 = vmatpush.msra.mxu0 %v173
    %247 = vmatpush.msra.mxu0 %v169
    %248 = vmatpush.msra.mxu0 %v165
    %249 = vmatpush.msra.mxu0 %v161
    %250 = vmatpush.msra.mxu0 %v157
    %251 = vmatpush.msra.mxu0 %v153
    %252 = vmatmul.f32.gmra.mxu0 0.0
    %v253 = vpop.f32.mrf.mxu0
    %v254 = vadd.f32 %v110, %v253
    %255 = vdwg.mxu0
    %256 = vmatpush.msra.mxu0 %v214
    %257 = vmatpush.msra.mxu0 %v210
    %258 = vmatpush.msra.mxu0 %v206
    %259 = vmatpush.msra.mxu0 %v202
    %260 = vmatpush.msra.mxu0 %v198
    %261 = vmatpush.msra.mxu0 %v194
    %262 = vmatpush.msra.mxu0 %v190
    %263 = vmatpush.msra.mxu0 %v186
    %264 = vmatpush.msra.mxu0 %v182
    %265 = vmatpush.msra.mxu0 %v178
    %266 = vmatpush.msra.mxu0 %v174
    %267 = vmatpush.msra.mxu0 %v170
    %268 = vmatpush.msra.mxu0 %v166
    %269 = vmatpush.msra.mxu0 %v162
    %270 = vmatpush.msra.mxu0 %v158
    %271 = vmatpush.msra.mxu0 %v154
    %272 = vmatmul.f32.gmra.mxu0 0.0
    %v273 = vpop.f32.mrf.mxu0
    %v274 = vadd.f32 %v130, %v273
    %275 = vdwg.mxu0
    %276 = vmatpush.msra.mxu0 %v215
    %277 = vmatpush.msra.mxu0 %v211
    %278 = vmatpush.msra.mxu0 %v207
    %279 = vmatpush.msra.mxu0 %v203
    %280 = vmatpush.msra.mxu0 %v199
    %281 = vmatpush.msra.mxu0 %v195
    %282 = vmatpush.msra.mxu0 %v191
    %283 = vmatpush.msra.mxu0 %v187
    %284 = vmatpush.msra.mxu0 %v183
    %285 = vmatpush.msra.mxu0 %v179
    %286 = vmatpush.msra.mxu0 %v175
    %287 = vmatpush.msra.mxu0 %v171
    %288 = vmatpush.msra.mxu0 %v167
    %289 = vmatpush.msra.mxu0 %v163
    %290 = vmatpush.msra.mxu0 %v159
    %291 = vmatpush.msra.mxu0 %v155
    %292 = vmatmul.f32.gmra.mxu0 0.0
    %v293 = vpop.f32.mrf.mxu0
    %v294 = vadd.f32 %v150, %v293
    %295 = vdwg.mxu0
    %v296 = vxor.u32 %v234, 2147483648
    %v297 = vmul.f32 %v296, 1.442695
    %v298 = vpow.pop %v297
    %v299 = vadd.f32 %v298, 1.0
    %v300 = vrcp.pop %v299
    %v301 = vmul.f32 %v299, %v300
    %v302 = vsub.f32 1.0, %v301
    %v303 = vmul.f32 %v300, %v302
    %v304 = vadd.f32 %v300, %v303
    %vm305 = vweird.f32 %v299
    %vm306 = vweird.f32 %v300
    %vm307 = vmor %vm305, %vm306
    %v308 = vsel %vm307, %v300, %v304
    %v309 = vand.u32 2147483647, %v299
    %vm310 = vcmp.eq.f32.partialorder %v309, 8.507059e+37
    %v311 = vand.u32 %v299, 2147483648
    %v312 = vor.u32 1.1754944e-38, %v311
    %v313 = vsel %vm310, %v312, %v308
    %v314 = vmul.f32 1.0, %v313
    %v315 = vxor.u32 %v254, 2147483648
    %v316 = vmul.f32 %v315, 1.442695
    %v317 = vpow.pop %v316
    %v318 = vadd.f32 %v317, 1.0
    %v319 = vrcp.pop %v318
    %v320 = vmul.f32 %v318, %v319
    %v321 = vsub.f32 1.0, %v320
    %v322 = vmul.f32 %v319, %v321
    %v323 = vadd.f32 %v319, %v322
    %vm324 = vweird.f32 %v318
    %vm325 = vweird.f32 %v319
    %vm326 = vmor %vm324, %vm325
    %v327 = vsel %vm326, %v319, %v323
    %v328 = vand.u32 2147483647, %v318
    %vm329 = vcmp.eq.f32.partialorder %v328, 8.507059e+37
    %v330 = vand.u32 %v318, 2147483648
    %v331 = vor.u32 1.1754944e-38, %v330
    %v332 = vsel %vm329, %v331, %v327
    %v333 = vmul.f32 1.0, %v332
    %v334 = vtanh.pop %v274
    %v335 = vxor.u32 %v294, 2147483648
    %v336 = vmul.f32 %v335, 1.442695
    %v337 = vpow.pop %v336
    %v338 = vadd.f32 %v337, 1.0
    %v339 = vrcp.pop %v338
    %v340 = vmul.f32 %v338, %v339
    %v341 = vsub.f32 1.0, %v340
    %v342 = vmul.f32 %v339, %v341
    %v343 = vadd.f32 %v339, %v342
    %vm344 = vweird.f32 %v338
    %vm345 = vweird.f32 %v339
    %vm346 = vmor %vm344, %vm345
    %v347 = vsel %vm346, %v339, %v343
    %v348 = vand.u32 2147483647, %v338
    %vm349 = vcmp.eq.f32.partialorder %v348, 8.507059e+37
    %v350 = vand.u32 %v338, 2147483648
    %v351 = vor.u32 1.1754944e-38, %v350
    %v352 = vsel %vm349, %v351, %v347
    %v353 = vmul.f32 1.0, %v352
    %v354 = vmul.f32 %v333, 0.0
    %v355 = vmul.f32 %v314, %v334
    %v356 = vadd.f32 %v354, %v355
    %v357 = vtanh.pop %v356
    %v358 = vmul.f32 %v353, %v357
    %v363 = vrot.slane %v90, 1
    %v364 = vrot.slane %v110, 1
    %v365 = vrot.slane %v130, 1
    %v366 = vrot.slane %v150, 1
    %371 = vmatpush.msra.mxu0 %v212
    %372 = vmatpush.msra.mxu0 %v208
    %373 = vmatpush.msra.mxu0 %v204
    %374 = vmatpush.msra.mxu0 %v200
    %375 = vmatpush.msra.mxu0 %v196
    %376 = vmatpush.msra.mxu0 %v192
    %377 = vmatpush.msra.mxu0 %v188
    %378 = vmatpush.msra.mxu0 %v184
    %379 = vmatpush.msra.mxu0 %v180
    %380 = vmatpush.msra.mxu0 %v176
    %381 = vmatpush.msra.mxu0 %v172
    %382 = vmatpush.msra.mxu0 %v168
    %383 = vmatpush.msra.mxu0 %v164
    %384 = vmatpush.msra.mxu0 %v160
    %385 = vmatpush.msra.mxu0 %v156
    %386 = vmatpush.msra.mxu0 %v152
    %387 = vmatmul.f32.gmra.mxu0 %v358
    %v388 = vpop.f32.mrf.mxu0
    %v389 = vadd.f32 %v363, %v388
    %390 = vdwg.mxu0
    %391 = vmatpush.msra.mxu0 %v213
    %392 = vmatpush.msra.mxu0 %v209
    %393 = vmatpush.msra.mxu0 %v205
    %394 = vmatpush.msra.mxu0 %v201
    %395 = vmatpush.msra.mxu0 %v197
    %396 = vmatpush.msra.mxu0 %v193
    %397 = vmatpush.msra.mxu0 %v189
    %398 = vmatpush.msra.mxu0 %v185
    %399 = vmatpush.msra.mxu0 %v181
    %400 = vmatpush.msra.mxu0 %v177
    %401 = vmatpush.msra.mxu0 %v173
    %402 = vmatpush.msra.mxu0 %v169
    %403 = vmatpush.msra.mxu0 %v165
    %404 = vmatpush.msra.mxu0 %v161
    %405 = vmatpush.msra.mxu0 %v157
    %406 = vmatpush.msra.mxu0 %v153
    %407 = vmatmul.f32.gmra.mxu0 %v358
    %v408 = vpop.f32.mrf.mxu0
    %v409 = vadd.f32 %v364, %v408
    %410 = vdwg.mxu0
    %411 = vmatpush.msra.mxu0 %v214
    %412 = vmatpush.msra.mxu0 %v210
    %413 = vmatpush.msra.mxu0 %v206
    %414 = vmatpush.msra.mxu0 %v202
    %415 = vmatpush.msra.mxu0 %v198
    %416 = vmatpush.msra.mxu0 %v194
    %417 = vmatpush.msra.mxu0 %v190
    %418 = vmatpush.msra.mxu0 %v186
    %419 = vmatpush.msra.mxu0 %v182
    %420 = vmatpush.msra.mxu0 %v178
    %421 = vmatpush.msra.mxu0 %v174
    %422 = vmatpush.msra.mxu0 %v170
    %423 = vmatpush.msra.mxu0 %v166
    %424 = vmatpush.msra.mxu0 %v162
    %425 = vmatpush.msra.mxu0 %v158
    %426 = vmatpush.msra.mxu0 %v154
    %427 = vmatmul.f32.gmra.mxu0 %v358
    %v428 = vpop.f32.mrf.mxu0
    %v429 = vadd.f32 %v365, %v428
    %430 = vdwg.mxu0
    %431 = vmatpush.msra.mxu0 %v215
    %432 = vmatpush.msra.mxu0 %v211
    %433 = vmatpush.msra.mxu0 %v207
    %434 = vmatpush.msra.mxu0 %v203
    %435 = vmatpush.msra.mxu0 %v199
    %436 = vmatpush.msra.mxu0 %v195
    %437 = vmatpush.msra.mxu0 %v191
    %438 = vmatpush.msra.mxu0 %v187
    %439 = vmatpush.msra.mxu0 %v183
    %440 = vmatpush.msra.mxu0 %v179
    %441 = vmatpush.msra.mxu0 %v175
    %442 = vmatpush.msra.mxu0 %v171
    %443 = vmatpush.msra.mxu0 %v167
    %444 = vmatpush.msra.mxu0 %v163
    %445 = vmatpush.msra.mxu0 %v159
    %446 = vmatpush.msra.mxu0 %v155
    %447 = vmatmul.f32.gmra.mxu0 %v358
    %v448 = vpop.f32.mrf.mxu0
    %v449 = vadd.f32 %v366, %v448
    %450 = vdwg.mxu0
    %v451 = vxor.u32 %v389, 2147483648
    %v452 = vmul.f32 %v451, 1.442695
    %v453 = vpow.pop %v452
    %v454 = vadd.f32 %v453, 1.0
    %v455 = vrcp.pop %v454
    %v456 = vmul.f32 %v454, %v455
    %v457 = vsub.f32 1.0, %v456
    %v458 = vmul.f32 %v455, %v457
    %v459 = vadd.f32 %v455, %v458
    %vm460 = vweird.f32 %v454
    %vm461 = vweird.f32 %v455
    %vm462 = vmor %vm460, %vm461
    %v463 = vsel %vm462, %v455, %v459
    %v464 = vand.u32 2147483647, %v454
    %vm465 = vcmp.eq.f32.partialorder %v464, 8.507059e+37
    %v466 = vand.u32 %v454, 2147483648
    %v467 = vor.u32 1.1754944e-38, %v466
    %v468 = vsel %vm465, %v467, %v463
    %v469 = vmul.f32 1.0, %v468
    %v470 = vxor.u32 %v409, 2147483648
    %v471 = vmul.f32 %v470, 1.442695
    %v472 = vpow.pop %v471
    %v473 = vadd.f32 %v472, 1.0
    %v474 = vrcp.pop %v473
    %v475 = vmul.f32 %v473, %v474
    %v476 = vsub.f32 1.0, %v475
    %v477 = vmul.f32 %v474, %v476
    %v478 = vadd.f32 %v474, %v477
    %vm479 = vweird.f32 %v473
    %vm480 = vweird.f32 %v474
    %vm481 = vmor %vm479, %vm480
    %v482 = vsel %vm481, %v474, %v478
    %v483 = vand.u32 2147483647, %v473
    %vm484 = vcmp.eq.f32.partialorder %v483, 8.507059e+37
    %v485 = vand.u32 %v473, 2147483648
    %v486 = vor.u32 1.1754944e-38, %v485
    %v487 = vsel %vm484, %v486, %v482
    %v488 = vmul.f32 1.0, %v487
    %v489 = vtanh.pop %v429
    %v490 = vxor.u32 %v449, 2147483648
    %v491 = vmul.f32 %v490, 1.442695
    %v492 = vpow.pop %v491
    %v493 = vadd.f32 %v492, 1.0
    %v494 = vrcp.pop %v493
    %v495 = vmul.f32 %v493, %v494
    %v496 = vsub.f32 1.0, %v495
    %v497 = vmul.f32 %v494, %v496
    %v498 = vadd.f32 %v494, %v497
    %vm499 = vweird.f32 %v493
    %vm500 = vweird.f32 %v494
    %vm501 = vmor %vm499, %vm500
    %v502 = vsel %vm501, %v494, %v498
    %v503 = vand.u32 2147483647, %v493
    %vm504 = vcmp.eq.f32.partialorder %v503, 8.507059e+37
    %v505 = vand.u32 %v493, 2147483648
    %v506 = vor.u32 1.1754944e-38, %v505
    %v507 = vsel %vm504, %v506, %v502
    %v508 = vmul.f32 1.0, %v507
    %v509 = vmul.f32 %v488, %v356
    %v510 = vmul.f32 %v469, %v489
    %v511 = vadd.f32 %v509, %v510
    %v512 = vtanh.pop %v511
    %v513 = vmul.f32 %v508, %v512
    %v514 = vrot.slane %v90, 2
    %v515 = vrot.slane %v110, 2
    %v516 = vrot.slane %v130, 2
    %v517 = vrot.slane %v150, 2
    %522 = vmatpush.msra.mxu0 %v212
    %523 = vmatpush.msra.mxu0 %v208
    %524 = vmatpush.msra.mxu0 %v204
    %525 = vmatpush.msra.mxu0 %v200
    %526 = vmatpush.msra.mxu0 %v196
    %527 = vmatpush.msra.mxu0 %v192
    %528 = vmatpush.msra.mxu0 %v188
    %529 = vmatpush.msra.mxu0 %v184
    %530 = vmatpush.msra.mxu0 %v180
    %531 = vmatpush.msra.mxu0 %v176
    %532 = vmatpush.msra.mxu0 %v172
    %533 = vmatpush.msra.mxu0 %v168
    %534 = vmatpush.msra.mxu0 %v164
    %535 = vmatpush.msra.mxu0 %v160
    %536 = vmatpush.msra.mxu0 %v156
    %537 = vmatpush.msra.mxu0 %v152
    %538 = vmatmul.f32.gmra.mxu0 %v513
    %v539 = vpop.f32.mrf.mxu0
    %v540 = vadd.f32 %v514, %v539
    %541 = vdwg.mxu0
    %542 = vmatpush.msra.mxu0 %v213
    %543 = vmatpush.msra.mxu0 %v209
    %544 = vmatpush.msra.mxu0 %v205
    %545 = vmatpush.msra.mxu0 %v201
    %546 = vmatpush.msra.mxu0 %v197
    %547 = vmatpush.msra.mxu0 %v193
    %548 = vmatpush.msra.mxu0 %v189
    %549 = vmatpush.msra.mxu0 %v185
    %550 = vmatpush.msra.mxu0 %v181
    %551 = vmatpush.msra.mxu0 %v177
    %552 = vmatpush.msra.mxu0 %v173
    %553 = vmatpush.msra.mxu0 %v169
    %554 = vmatpush.msra.mxu0 %v165
    %555 = vmatpush.msra.mxu0 %v161
    %556 = vmatpush.msra.mxu0 %v157
    %557 = vmatpush.msra.mxu0 %v153
    %558 = vmatmul.f32.gmra.mxu0 %v513
    %v559 = vpop.f32.mrf.mxu0
    %v560 = vadd.f32 %v515, %v559
    %561 = vdwg.mxu0
    %562 = vmatpush.msra.mxu0 %v214
    %563 = vmatpush.msra.mxu0 %v210
    %564 = vmatpush.msra.mxu0 %v206
    %565 = vmatpush.msra.mxu0 %v202
    %566 = vmatpush.msra.mxu0 %v198
    %567 = vmatpush.msra.mxu0 %v194
    %568 = vmatpush.msra.mxu0 %v190
    %569 = vmatpush.msra.mxu0 %v186
    %570 = vmatpush.msra.mxu0 %v182
    %571 = vmatpush.msra.mxu0 %v178
    %572 = vmatpush.msra.mxu0 %v174
    %573 = vmatpush.msra.mxu0 %v170
    %574 = vmatpush.msra.mxu0 %v166
    %575 = vmatpush.msra.mxu0 %v162
    %576 = vmatpush.msra.mxu0 %v158
    %577 = vmatpush.msra.mxu0 %v154
    %578 = vmatmul.f32.gmra.mxu0 %v513
    %v579 = vpop.f32.mrf.mxu0
    %v580 = vadd.f32 %v516, %v579
    %581 = vdwg.mxu0
    %582 = vmatpush.msra.mxu0 %v215
    %583 = vmatpush.msra.mxu0 %v211
    %584 = vmatpush.msra.mxu0 %v207
    %585 = vmatpush.msra.mxu0 %v203
    %586 = vmatpush.msra.mxu0 %v199
    %587 = vmatpush.msra.mxu0 %v195
    %588 = vmatpush.msra.mxu0 %v191
    %589 = vmatpush.msra.mxu0 %v187
    %590 = vmatpush.msra.mxu0 %v183
    %591 = vmatpush.msra.mxu0 %v179
    %592 = vmatpush.msra.mxu0 %v175
    %593 = vmatpush.msra.mxu0 %v171
    %594 = vmatpush.msra.mxu0 %v167
    %595 = vmatpush.msra.mxu0 %v163
    %596 = vmatpush.msra.mxu0 %v159
    %597 = vmatpush.msra.mxu0 %v155
    %598 = vmatmul.f32.gmra.mxu0 %v513
    %v599 = vpop.f32.mrf.mxu0
    %v600 = vadd.f32 %v517, %v599
    %601 = vdwg.mxu0
    %v602 = vxor.u32 %v540, 2147483648
    %v603 = vmul.f32 %v602, 1.442695
    %v604 = vpow.pop %v603
    %v605 = vadd.f32 %v604, 1.0
    %v606 = vrcp.pop %v605
    %v607 = vmul.f32 %v605, %v606
    %v608 = vsub.f32 1.0, %v607
    %v609 = vmul.f32 %v606, %v608
    %v610 = vadd.f32 %v606, %v609
    %vm611 = vweird.f32 %v605
    %vm612 = vweird.f32 %v606
    %vm613 = vmor %vm611, %vm612
    %v614 = vsel %vm613, %v606, %v610
    %v615 = vand.u32 2147483647, %v605
    %vm616 = vcmp.eq.f32.partialorder %v615, 8.507059e+37
    %v617 = vand.u32 %v605, 2147483648
    %v618 = vor.u32 1.1754944e-38, %v617
    %v619 = vsel %vm616, %v618, %v614
    %v620 = vmul.f32 1.0, %v619
    %v621 = vxor.u32 %v560, 2147483648
    %v622 = vmul.f32 %v621, 1.442695
    %v623 = vpow.pop %v622
    %v624 = vadd.f32 %v623, 1.0
    %v625 = vrcp.pop %v624
    %v626 = vmul.f32 %v624, %v625
    %v627 = vsub.f32 1.0, %v626
    %v628 = vmul.f32 %v625, %v627
    %v629 = vadd.f32 %v625, %v628
    %vm630 = vweird.f32 %v624
    %vm631 = vweird.f32 %v625
    %vm632 = vmor %vm630, %vm631
    %v633 = vsel %vm632, %v625, %v629
    %v634 = vand.u32 2147483647, %v624
    %vm635 = vcmp.eq.f32.partialorder %v634, 8.507059e+37
    %v636 = vand.u32 %v624, 2147483648
    %v637 = vor.u32 1.1754944e-38, %v636
    %v638 = vsel %vm635, %v637, %v633
    %v639 = vmul.f32 1.0, %v638
    %v640 = vtanh.pop %v580
    %v641 = vxor.u32 %v600, 2147483648
    %v642 = vmul.f32 %v641, 1.442695
    %v643 = vpow.pop %v642
    %v644 = vadd.f32 %v643, 1.0
    %v645 = vrcp.pop %v644
    %v646 = vmul.f32 %v644, %v645
    %v647 = vsub.f32 1.0, %v646
    %v648 = vmul.f32 %v645, %v647
    %v649 = vadd.f32 %v645, %v648
    %vm650 = vweird.f32 %v644
    %vm651 = vweird.f32 %v645
    %vm652 = vmor %vm650, %vm651
    %v653 = vsel %vm652, %v645, %v649
    %v654 = vand.u32 2147483647, %v644
    %vm655 = vcmp.eq.f32.partialorder %v654, 8.507059e+37
    %v656 = vand.u32 %v644, 2147483648
    %v657 = vor.u32 1.1754944e-38, %v656
    %v658 = vsel %vm655, %v657, %v653
    %v659 = vmul.f32 1.0, %v658
    %v660 = vmul.f32 %v639, %v511
    %v661 = vmul.f32 %v620, %v640
    %v662 = vadd.f32 %v660, %v661
    %v663 = vtanh.pop %v662
    %v664 = vmul.f32 %v659, %v663
    %v665 = vrot.slane %v90, 3
    %v666 = vrot.slane %v110, 3
    %v667 = vrot.slane %v130, 3
    %v668 = vrot.slane %v150, 3
    %673 = vmatpush.msra.mxu0 %v212
    %674 = vmatpush.msra.mxu0 %v208
    %675 = vmatpush.msra.mxu0 %v204
    %676 = vmatpush.msra.mxu0 %v200
    %677 = vmatpush.msra.mxu0 %v196
    %678 = vmatpush.msra.mxu0 %v192
    %679 = vmatpush.msra.mxu0 %v188
    %680 = vmatpush.msra.mxu0 %v184
    %681 = vmatpush.msra.mxu0 %v180
    %682 = vmatpush.msra.mxu0 %v176
    %683 = vmatpush.msra.mxu0 %v172
    %684 = vmatpush.msra.mxu0 %v168
    %685 = vmatpush.msra.mxu0 %v164
    %686 = vmatpush.msra.mxu0 %v160
    %687 = vmatpush.msra.mxu0 %v156
    %688 = vmatpush.msra.mxu0 %v152
    %689 = vmatmul.f32.gmra.mxu0 %v664
    %v690 = vpop.f32.mrf.mxu0
    %v691 = vadd.f32 %v665, %v690
    %692 = vdwg.mxu0
    %693 = vmatpush.msra.mxu0 %v213
    %694 = vmatpush.msra.mxu0 %v209
    %695 = vmatpush.msra.mxu0 %v205
    %696 = vmatpush.msra.mxu0 %v201
    %697 = vmatpush.msra.mxu0 %v197
    %698 = vmatpush.msra.mxu0 %v193
    %699 = vmatpush.msra.mxu0 %v189
    %700 = vmatpush.msra.mxu0 %v185
    %701 = vmatpush.msra.mxu0 %v181
    %702 = vmatpush.msra.mxu0 %v177
    %703 = vmatpush.msra.mxu0 %v173
    %704 = vmatpush.msra.mxu0 %v169
    %705 = vmatpush.msra.mxu0 %v165
    %706 = vmatpush.msra.mxu0 %v161
    %707 = vmatpush.msra.mxu0 %v157
    %708 = vmatpush.msra.mxu0 %v153
    %709 = vmatmul.f32.gmra.mxu0 %v664
    %v710 = vpop.f32.mrf.mxu0
    %v711 = vadd.f32 %v666, %v710
    %712 = vdwg.mxu0
    %713 = vmatpush.msra.mxu0 %v214
    %714 = vmatpush.msra.mxu0 %v210
    %715 = vmatpush.msra.mxu0 %v206
    %716 = vmatpush.msra.mxu0 %v202
    %717 = vmatpush.msra.mxu0 %v198
    %718 = vmatpush.msra.mxu0 %v194
    %719 = vmatpush.msra.mxu0 %v190
    %720 = vmatpush.msra.mxu0 %v186
    %721 = vmatpush.msra.mxu0 %v182
    %722 = vmatpush.msra.mxu0 %v178
    %723 = vmatpush.msra.mxu0 %v174
    %724 = vmatpush.msra.mxu0 %v170
    %725 = vmatpush.msra.mxu0 %v166
    %726 = vmatpush.msra.mxu0 %v162
    %727 = vmatpush.msra.mxu0 %v158
    %728 = vmatpush.msra.mxu0 %v154
    %729 = vmatmul.f32.gmra.mxu0 %v664
    %v730 = vpop.f32.mrf.mxu0
    %v731 = vadd.f32 %v667, %v730
    %732 = vdwg.mxu0
    %733 = vmatpush.msra.mxu0 %v215
    %734 = vmatpush.msra.mxu0 %v211
    %735 = vmatpush.msra.mxu0 %v207
    %736 = vmatpush.msra.mxu0 %v203
    %737 = vmatpush.msra.mxu0 %v199
    %738 = vmatpush.msra.mxu0 %v195
    %739 = vmatpush.msra.mxu0 %v191
    %740 = vmatpush.msra.mxu0 %v187
    %741 = vmatpush.msra.mxu0 %v183
    %742 = vmatpush.msra.mxu0 %v179
    %743 = vmatpush.msra.mxu0 %v175
    %744 = vmatpush.msra.mxu0 %v171
    %745 = vmatpush.msra.mxu0 %v167
    %746 = vmatpush.msra.mxu0 %v163
    %747 = vmatpush.msra.mxu0 %v159
    %748 = vmatpush.msra.mxu0 %v155
    %749 = vmatmul.f32.gmra.mxu0 %v664
    %v750 = vpop.f32.mrf.mxu0
    %v751 = vadd.f32 %v668, %v750
    %752 = vdwg.mxu0
    %v753 = vxor.u32 %v691, 2147483648
    %v754 = vmul.f32 %v753, 1.442695
    %v755 = vpow.pop %v754
    %v756 = vadd.f32 %v755, 1.0
    %v757 = vrcp.pop %v756
    %v758 = vmul.f32 %v756, %v757
    %v759 = vsub.f32 1.0, %v758
    %v760 = vmul.f32 %v757, %v759
    %v761 = vadd.f32 %v757, %v760
    %vm762 = vweird.f32 %v756
    %vm763 = vweird.f32 %v757
    %vm764 = vmor %vm762, %vm763
    %v765 = vsel %vm764, %v757, %v761
    %v766 = vand.u32 2147483647, %v756
    %vm767 = vcmp.eq.f32.partialorder %v766, 8.507059e+37
    %v768 = vand.u32 %v756, 2147483648
    %v769 = vor.u32 1.1754944e-38, %v768
    %v770 = vsel %vm767, %v769, %v765
    %v771 = vmul.f32 1.0, %v770
    %v772 = vxor.u32 %v711, 2147483648
    %v773 = vmul.f32 %v772, 1.442695
    %v774 = vpow.pop %v773
    %v775 = vadd.f32 %v774, 1.0
    %v776 = vrcp.pop %v775
    %v777 = vmul.f32 %v775, %v776
    %v778 = vsub.f32 1.0, %v777
    %v779 = vmul.f32 %v776, %v778
    %v780 = vadd.f32 %v776, %v779
    %vm781 = vweird.f32 %v775
    %vm782 = vweird.f32 %v776
    %vm783 = vmor %vm781, %vm782
    %v784 = vsel %vm783, %v776, %v780
    %v785 = vand.u32 2147483647, %v775
    %vm786 = vcmp.eq.f32.partialorder %v785, 8.507059e+37
    %v787 = vand.u32 %v775, 2147483648
    %v788 = vor.u32 1.1754944e-38, %v787
    %v789 = vsel %vm786, %v788, %v784
    %v790 = vmul.f32 1.0, %v789
    %v791 = vtanh.pop %v731
    %v792 = vxor.u32 %v751, 2147483648
    %v793 = vmul.f32 %v792, 1.442695
    %v794 = vpow.pop %v793
    %v795 = vadd.f32 %v794, 1.0
    %v796 = vrcp.pop %v795
    %v797 = vmul.f32 %v795, %v796
    %v798 = vsub.f32 1.0, %v797
    %v799 = vmul.f32 %v796, %v798
    %v800 = vadd.f32 %v796, %v799
    %vm801 = vweird.f32 %v795
    %vm802 = vweird.f32 %v796
    %vm803 = vmor %vm801, %vm802
    %v804 = vsel %vm803, %v796, %v800
    %v805 = vand.u32 2147483647, %v795
    %vm806 = vcmp.eq.f32.partialorder %v805, 8.507059e+37
    %v807 = vand.u32 %v795, 2147483648
    %v808 = vor.u32 1.1754944e-38, %v807
    %v809 = vsel %vm806, %v808, %v804
    %v810 = vmul.f32 1.0, %v809
    %v811 = vmul.f32 %v790, %v662
    %v812 = vmul.f32 %v771, %v791
    %v813 = vadd.f32 %v811, %v812
    %v814 = vtanh.pop %v813
    %v815 = vmul.f32 %v810, %v814
    %v816 = vrot.slane %v90, 4
    %v817 = vrot.slane %v110, 4
    %v818 = vrot.slane %v130, 4
    %v819 = vrot.slane %v150, 4
    %824 = vmatpush.msra.mxu0 %v212
    %825 = vmatpush.msra.mxu0 %v208
    %826 = vmatpush.msra.mxu0 %v204
    %827 = vmatpush.msra.mxu0 %v200
    %828 = vmatpush.msra.mxu0 %v196
    %829 = vmatpush.msra.mxu0 %v192
    %830 = vmatpush.msra.mxu0 %v188
    %831 = vmatpush.msra.mxu0 %v184
    %832 = vmatpush.msra.mxu0 %v180
    %833 = vmatpush.msra.mxu0 %v176
    %834 = vmatpush.msra.mxu0 %v172
    %835 = vmatpush.msra.mxu0 %v168
    %836 = vmatpush.msra.mxu0 %v164
    %837 = vmatpush.msra.mxu0 %v160
    %838 = vmatpush.msra.mxu0 %v156
    %839 = vmatpush.msra.mxu0 %v152
    %840 = vmatmul.f32.gmra.mxu0 %v815
    %v841 = vpop.f32.mrf.mxu0
    %v842 = vadd.f32 %v816, %v841
    %843 = vdwg.mxu0
    %844 = vmatpush.msra.mxu0 %v213
    %845 = vmatpush.msra.mxu0 %v209
    %846 = vmatpush.msra.mxu0 %v205
    %847 = vmatpush.msra.mxu0 %v201
    %848 = vmatpush.msra.mxu0 %v197
    %849 = vmatpush.msra.mxu0 %v193
    %850 = vmatpush.msra.mxu0 %v189
    %851 = vmatpush.msra.mxu0 %v185
    %852 = vmatpush.msra.mxu0 %v181
    %853 = vmatpush.msra.mxu0 %v177
    %854 = vmatpush.msra.mxu0 %v173
    %855 = vmatpush.msra.mxu0 %v169
    %856 = vmatpush.msra.mxu0 %v165
    %857 = vmatpush.msra.mxu0 %v161
    %858 = vmatpush.msra.mxu0 %v157
    %859 = vmatpush.msra.mxu0 %v153
    %860 = vmatmul.f32.gmra.mxu0 %v815
    %v861 = vpop.f32.mrf.mxu0
    %v862 = vadd.f32 %v817, %v861
    %863 = vdwg.mxu0
    %864 = vmatpush.msra.mxu0 %v214
    %865 = vmatpush.msra.mxu0 %v210
    %866 = vmatpush.msra.mxu0 %v206
    %867 = vmatpush.msra.mxu0 %v202
    %868 = vmatpush.msra.mxu0 %v198
    %869 = vmatpush.msra.mxu0 %v194
    %870 = vmatpush.msra.mxu0 %v190
    %871 = vmatpush.msra.mxu0 %v186
    %872 = vmatpush.msra.mxu0 %v182
    %873 = vmatpush.msra.mxu0 %v178
    %874 = vmatpush.msra.mxu0 %v174
    %875 = vmatpush.msra.mxu0 %v170
    %876 = vmatpush.msra.mxu0 %v166
    %877 = vmatpush.msra.mxu0 %v162
    %878 = vmatpush.msra.mxu0 %v158
    %879 = vmatpush.msra.mxu0 %v154
    %880 = vmatmul.f32.gmra.mxu0 %v815
    %v881 = vpop.f32.mrf.mxu0
    %v882 = vadd.f32 %v818, %v881
    %883 = vdwg.mxu0
    %884 = vmatpush.msra.mxu0 %v215
    %885 = vmatpush.msra.mxu0 %v211
    %886 = vmatpush.msra.mxu0 %v207
    %887 = vmatpush.msra.mxu0 %v203
    %888 = vmatpush.msra.mxu0 %v199
    %889 = vmatpush.msra.mxu0 %v195
    %890 = vmatpush.msra.mxu0 %v191
    %891 = vmatpush.msra.mxu0 %v187
    %892 = vmatpush.msra.mxu0 %v183
    %893 = vmatpush.msra.mxu0 %v179
    %894 = vmatpush.msra.mxu0 %v175
    %895 = vmatpush.msra.mxu0 %v171
    %896 = vmatpush.msra.mxu0 %v167
    %897 = vmatpush.msra.mxu0 %v163
    %898 = vmatpush.msra.mxu0 %v159
    %899 = vmatpush.msra.mxu0 %v155
    %900 = vmatmul.f32.gmra.mxu0 %v815
    %v901 = vpop.f32.mrf.mxu0
    %v902 = vadd.f32 %v819, %v901
    %903 = vdwg.mxu0
    %v904 = vxor.u32 %v842, 2147483648
    %v905 = vmul.f32 %v904, 1.442695
    %v906 = vpow.pop %v905
    %v907 = vadd.f32 %v906, 1.0
    %v908 = vrcp.pop %v907
    %v909 = vmul.f32 %v907, %v908
    %v910 = vsub.f32 1.0, %v909
    %v911 = vmul.f32 %v908, %v910
    %v912 = vadd.f32 %v908, %v911
    %vm913 = vweird.f32 %v907
    %vm914 = vweird.f32 %v908
    %vm915 = vmor %vm913, %vm914
    %v916 = vsel %vm915, %v908, %v912
    %v917 = vand.u32 2147483647, %v907
    %vm918 = vcmp.eq.f32.partialorder %v917, 8.507059e+37
    %v919 = vand.u32 %v907, 2147483648
    %v920 = vor.u32 1.1754944e-38, %v919
    %v921 = vsel %vm918, %v920, %v916
    %v922 = vmul.f32 1.0, %v921
    %v923 = vxor.u32 %v862, 2147483648
    %v924 = vmul.f32 %v923, 1.442695
    %v925 = vpow.pop %v924
    %v926 = vadd.f32 %v925, 1.0
    %v927 = vrcp.pop %v926
    %v928 = vmul.f32 %v926, %v927
    %v929 = vsub.f32 1.0, %v928
    %v930 = vmul.f32 %v927, %v929
    %v931 = vadd.f32 %v927, %v930
    %vm932 = vweird.f32 %v926
    %vm933 = vweird.f32 %v927
    %vm934 = vmor %vm932, %vm933
    %v935 = vsel %vm934, %v927, %v931
    %v936 = vand.u32 2147483647, %v926
    %vm937 = vcmp.eq.f32.partialorder %v936, 8.507059e+37
    %v938 = vand.u32 %v926, 2147483648
    %v939 = vor.u32 1.1754944e-38, %v938
    %v940 = vsel %vm937, %v939, %v935
    %v941 = vmul.f32 1.0, %v940
    %v942 = vtanh.pop %v882
    %v943 = vxor.u32 %v902, 2147483648
    %v944 = vmul.f32 %v943, 1.442695
    %v945 = vpow.pop %v944
    %v946 = vadd.f32 %v945, 1.0
    %v947 = vrcp.pop %v946
    %v948 = vmul.f32 %v946, %v947
    %v949 = vsub.f32 1.0, %v948
    %v950 = vmul.f32 %v947, %v949
    %v951 = vadd.f32 %v947, %v950
    %vm952 = vweird.f32 %v946
    %vm953 = vweird.f32 %v947
    %vm954 = vmor %vm952, %vm953
    %v955 = vsel %vm954, %v947, %v951
    %v956 = vand.u32 2147483647, %v946
    %vm957 = vcmp.eq.f32.partialorder %v956, 8.507059e+37
    %v958 = vand.u32 %v946, 2147483648
    %v959 = vor.u32 1.1754944e-38, %v958
    %v960 = vsel %vm957, %v959, %v955
    %v961 = vmul.f32 1.0, %v960
    %v962 = vmul.f32 %v941, %v813
    %v963 = vmul.f32 %v922, %v942
    %v964 = vadd.f32 %v962, %v963
    %v965 = vtanh.pop %v964
    %v966 = vmul.f32 %v961, %v965
    %v967 = vrot.slane %v90, 5
    %v968 = vrot.slane %v110, 5
    %v969 = vrot.slane %v130, 5
    %v970 = vrot.slane %v150, 5
    %975 = vmatpush.msra.mxu0 %v212
    %976 = vmatpush.msra.mxu0 %v208
    %977 = vmatpush.msra.mxu0 %v204
    %978 = vmatpush.msra.mxu0 %v200
    %979 = vmatpush.msra.mxu0 %v196
    %980 = vmatpush.msra.mxu0 %v192
    %981 = vmatpush.msra.mxu0 %v188
    %982 = vmatpush.msra.mxu0 %v184
    %983 = vmatpush.msra.mxu0 %v180
    %984 = vmatpush.msra.mxu0 %v176
    %985 = vmatpush.msra.mxu0 %v172
    %986 = vmatpush.msra.mxu0 %v168
    %987 = vmatpush.msra.mxu0 %v164
    %988 = vmatpush.msra.mxu0 %v160
    %989 = vmatpush.msra.mxu0 %v156
    %990 = vmatpush.msra.mxu0 %v152
    %991 = vmatmul.f32.gmra.mxu0 %v966
    %v992 = vpop.f32.mrf.mxu0
    %v993 = vadd.f32 %v967, %v992
    %994 = vdwg.mxu0
    %995 = vmatpush.msra.mxu0 %v213
    %996 = vmatpush.msra.mxu0 %v209
    %997 = vmatpush.msra.mxu0 %v205
    %998 = vmatpush.msra.mxu0 %v201
    %999 = vmatpush.msra.mxu0 %v197
    %1000 = vmatpush.msra.mxu0 %v193
    %1001 = vmatpush.msra.mxu0 %v189
    %1002 = vmatpush.msra.mxu0 %v185
    %1003 = vmatpush.msra.mxu0 %v181
    %1004 = vmatpush.msra.mxu0 %v177
    %1005 = vmatpush.msra.mxu0 %v173
    %1006 = vmatpush.msra.mxu0 %v169
    %1007 = vmatpush.msra.mxu0 %v165
    %1008 = vmatpush.msra.mxu0 %v161
    %1009 = vmatpush.msra.mxu0 %v157
    %1010 = vmatpush.msra.mxu0 %v153
    %1011 = vmatmul.f32.gmra.mxu0 %v966
    %v1012 = vpop.f32.mrf.mxu0
    %v1013 = vadd.f32 %v968, %v1012
    %1014 = vdwg.mxu0
    %1015 = vmatpush.msra.mxu0 %v214
    %1016 = vmatpush.msra.mxu0 %v210
    %1017 = vmatpush.msra.mxu0 %v206
    %1018 = vmatpush.msra.mxu0 %v202
    %1019 = vmatpush.msra.mxu0 %v198
    %1020 = vmatpush.msra.mxu0 %v194
    %1021 = vmatpush.msra.mxu0 %v190
    %1022 = vmatpush.msra.mxu0 %v186
    %1023 = vmatpush.msra.mxu0 %v182
    %1024 = vmatpush.msra.mxu0 %v178
    %1025 = vmatpush.msra.mxu0 %v174
    %1026 = vmatpush.msra.mxu0 %v170
    %1027 = vmatpush.msra.mxu0 %v166
    %1028 = vmatpush.msra.mxu0 %v162
    %1029 = vmatpush.msra.mxu0 %v158
    %1030 = vmatpush.msra.mxu0 %v154
    %1031 = vmatmul.f32.gmra.mxu0 %v966
    %v1032 = vpop.f32.mrf.mxu0
    %v1033 = vadd.f32 %v969, %v1032
    %1034 = vdwg.mxu0
    %1035 = vmatpush.msra.mxu0 %v215
    %1036 = vmatpush.msra.mxu0 %v211
    %1037 = vmatpush.msra.mxu0 %v207
    %1038 = vmatpush.msra.mxu0 %v203
    %1039 = vmatpush.msra.mxu0 %v199
    %1040 = vmatpush.msra.mxu0 %v195
    %1041 = vmatpush.msra.mxu0 %v191
    %1042 = vmatpush.msra.mxu0 %v187
    %1043 = vmatpush.msra.mxu0 %v183
    %1044 = vmatpush.msra.mxu0 %v179
    %1045 = vmatpush.msra.mxu0 %v175
    %1046 = vmatpush.msra.mxu0 %v171
    %1047 = vmatpush.msra.mxu0 %v167
    %1048 = vmatpush.msra.mxu0 %v163
    %1049 = vmatpush.msra.mxu0 %v159
    %1050 = vmatpush.msra.mxu0 %v155
    %1051 = vmatmul.f32.gmra.mxu0 %v966
    %v1052 = vpop.f32.mrf.mxu0
    %v1053 = vadd.f32 %v970, %v1052
    %1054 = vdwg.mxu0
    %v1055 = vxor.u32 %v993, 2147483648
    %v1056 = vmul.f32 %v1055, 1.442695
    %v1057 = vpow.pop %v1056
    %v1058 = vadd.f32 %v1057, 1.0
    %v1059 = vrcp.pop %v1058
    %v1060 = vmul.f32 %v1058, %v1059
    %v1061 = vsub.f32 1.0, %v1060
    %v1062 = vmul.f32 %v1059, %v1061
    %v1063 = vadd.f32 %v1059, %v1062
    %vm1064 = vweird.f32 %v1058
    %vm1065 = vweird.f32 %v1059
    %vm1066 = vmor %vm1064, %vm1065
    %v1067 = vsel %vm1066, %v1059, %v1063
    %v1068 = vand.u32 2147483647, %v1058
    %vm1069 = vcmp.eq.f32.partialorder %v1068, 8.507059e+37
    %v1070 = vand.u32 %v1058, 2147483648
    %v1071 = vor.u32 1.1754944e-38, %v1070
    %v1072 = vsel %vm1069, %v1071, %v1067
    %v1073 = vmul.f32 1.0, %v1072
    %v1074 = vxor.u32 %v1013, 2147483648
    %v1075 = vmul.f32 %v1074, 1.442695
    %v1076 = vpow.pop %v1075
    %v1077 = vadd.f32 %v1076, 1.0
    %v1078 = vrcp.pop %v1077
    %v1079 = vmul.f32 %v1077, %v1078
    %v1080 = vsub.f32 1.0, %v1079
    %v1081 = vmul.f32 %v1078, %v1080
    %v1082 = vadd.f32 %v1078, %v1081
    %vm1083 = vweird.f32 %v1077
    %vm1084 = vweird.f32 %v1078
    %vm1085 = vmor %vm1083, %vm1084
    %v1086 = vsel %vm1085, %v1078, %v1082
    %v1087 = vand.u32 2147483647, %v1077
    %vm1088 = vcmp.eq.f32.partialorder %v1087, 8.507059e+37
    %v1089 = vand.u32 %v1077, 2147483648
    %v1090 = vor.u32 1.1754944e-38, %v1089
    %v1091 = vsel %vm1088, %v1090, %v1086
    %v1092 = vmul.f32 1.0, %v1091
    %v1093 = vtanh.pop %v1033
    %v1094 = vxor.u32 %v1053, 2147483648
    %v1095 = vmul.f32 %v1094, 1.442695
    %v1096 = vpow.pop %v1095
    %v1097 = vadd.f32 %v1096, 1.0
    %v1098 = vrcp.pop %v1097
    %v1099 = vmul.f32 %v1097, %v1098
    %v1100 = vsub.f32 1.0, %v1099
    %v1101 = vmul.f32 %v1098, %v1100
    %v1102 = vadd.f32 %v1098, %v1101
    %vm1103 = vweird.f32 %v1097
    %vm1104 = vweird.f32 %v1098
    %vm1105 = vmor %vm1103, %vm1104
    %v1106 = vsel %vm1105, %v1098, %v1102
    %v1107 = vand.u32 2147483647, %v1097
    %vm1108 = vcmp.eq.f32.partialorder %v1107, 8.507059e+37
    %v1109 = vand.u32 %v1097, 2147483648
    %v1110 = vor.u32 1.1754944e-38, %v1109
    %v1111 = vsel %vm1108, %v1110, %v1106
    %v1112 = vmul.f32 1.0, %v1111
    %v1113 = vmul.f32 %v1092, %v964
    %v1114 = vmul.f32 %v1073, %v1093
    %v1115 = vadd.f32 %v1113, %v1114
    %v1116 = vtanh.pop %v1115
    %v1117 = vmul.f32 %v1112, %v1116
    %v1118 = vrot.slane %v90, 6
    %v1119 = vrot.slane %v110, 6
    %v1120 = vrot.slane %v130, 6
    %v1121 = vrot.slane %v150, 6
    %1126 = vmatpush.msra.mxu0 %v212
    %1127 = vmatpush.msra.mxu0 %v208
    %1128 = vmatpush.msra.mxu0 %v204
    %1129 = vmatpush.msra.mxu0 %v200
    %1130 = vmatpush.msra.mxu0 %v196
    %1131 = vmatpush.msra.mxu0 %v192
    %1132 = vmatpush.msra.mxu0 %v188
    %1133 = vmatpush.msra.mxu0 %v184
    %1134 = vmatpush.msra.mxu0 %v180
    %1135 = vmatpush.msra.mxu0 %v176
    %1136 = vmatpush.msra.mxu0 %v172
    %1137 = vmatpush.msra.mxu0 %v168
    %1138 = vmatpush.msra.mxu0 %v164
    %1139 = vmatpush.msra.mxu0 %v160
    %1140 = vmatpush.msra.mxu0 %v156
    %1141 = vmatpush.msra.mxu0 %v152
    %1142 = vmatmul.f32.gmra.mxu0 %v1117
    %v1143 = vpop.f32.mrf.mxu0
    %v1144 = vadd.f32 %v1118, %v1143
    %1145 = vdwg.mxu0
    %1146 = vmatpush.msra.mxu0 %v213
    %1147 = vmatpush.msra.mxu0 %v209
    %1148 = vmatpush.msra.mxu0 %v205
    %1149 = vmatpush.msra.mxu0 %v201
    %1150 = vmatpush.msra.mxu0 %v197
    %1151 = vmatpush.msra.mxu0 %v193
    %1152 = vmatpush.msra.mxu0 %v189
    %1153 = vmatpush.msra.mxu0 %v185
    %1154 = vmatpush.msra.mxu0 %v181
    %1155 = vmatpush.msra.mxu0 %v177
    %1156 = vmatpush.msra.mxu0 %v173
    %1157 = vmatpush.msra.mxu0 %v169
    %1158 = vmatpush.msra.mxu0 %v165
    %1159 = vmatpush.msra.mxu0 %v161
    %1160 = vmatpush.msra.mxu0 %v157
    %1161 = vmatpush.msra.mxu0 %v153
    %1162 = vmatmul.f32.gmra.mxu0 %v1117
    %v1163 = vpop.f32.mrf.mxu0
    %v1164 = vadd.f32 %v1119, %v1163
    %1165 = vdwg.mxu0
    %1166 = vmatpush.msra.mxu0 %v214
    %1167 = vmatpush.msra.mxu0 %v210
    %1168 = vmatpush.msra.mxu0 %v206
    %1169 = vmatpush.msra.mxu0 %v202
    %1170 = vmatpush.msra.mxu0 %v198
    %1171 = vmatpush.msra.mxu0 %v194
    %1172 = vmatpush.msra.mxu0 %v190
    %1173 = vmatpush.msra.mxu0 %v186
    %1174 = vmatpush.msra.mxu0 %v182
    %1175 = vmatpush.msra.mxu0 %v178
    %1176 = vmatpush.msra.mxu0 %v174
    %1177 = vmatpush.msra.mxu0 %v170
    %1178 = vmatpush.msra.mxu0 %v166
    %1179 = vmatpush.msra.mxu0 %v162
    %1180 = vmatpush.msra.mxu0 %v158
    %1181 = vmatpush.msra.mxu0 %v154
    %1182 = vmatmul.f32.gmra.mxu0 %v1117
    %v1183 = vpop.f32.mrf.mxu0
    %v1184 = vadd.f32 %v1120, %v1183
    %1185 = vdwg.mxu0
    %1186 = vmatpush.msra.mxu0 %v215
    %1187 = vmatpush.msra.mxu0 %v211
    %1188 = vmatpush.msra.mxu0 %v207
    %1189 = vmatpush.msra.mxu0 %v203
    %1190 = vmatpush.msra.mxu0 %v199
    %1191 = vmatpush.msra.mxu0 %v195
    %1192 = vmatpush.msra.mxu0 %v191
    %1193 = vmatpush.msra.mxu0 %v187
    %1194 = vmatpush.msra.mxu0 %v183
    %1195 = vmatpush.msra.mxu0 %v179
    %1196 = vmatpush.msra.mxu0 %v175
    %1197 = vmatpush.msra.mxu0 %v171
    %1198 = vmatpush.msra.mxu0 %v167
    %1199 = vmatpush.msra.mxu0 %v163
    %1200 = vmatpush.msra.mxu0 %v159
    %1201 = vmatpush.msra.mxu0 %v155
    %1202 = vmatmul.f32.gmra.mxu0 %v1117
    %v1203 = vpop.f32.mrf.mxu0
    %v1204 = vadd.f32 %v1121, %v1203
    %1205 = vdwg.mxu0
    %v1206 = vxor.u32 %v1144, 2147483648
    %v1207 = vmul.f32 %v1206, 1.442695
    %v1208 = vpow.pop %v1207
    %v1209 = vadd.f32 %v1208, 1.0
    %v1210 = vrcp.pop %v1209
    %v1211 = vmul.f32 %v1209, %v1210
    %v1212 = vsub.f32 1.0, %v1211
    %v1213 = vmul.f32 %v1210, %v1212
    %v1214 = vadd.f32 %v1210, %v1213
    %vm1215 = vweird.f32 %v1209
    %vm1216 = vweird.f32 %v1210
    %vm1217 = vmor %vm1215, %vm1216
    %v1218 = vsel %vm1217, %v1210, %v1214
    %v1219 = vand.u32 2147483647, %v1209
    %vm1220 = vcmp.eq.f32.partialorder %v1219, 8.507059e+37
    %v1221 = vand.u32 %v1209, 2147483648
    %v1222 = vor.u32 1.1754944e-38, %v1221
    %v1223 = vsel %vm1220, %v1222, %v1218
    %v1224 = vmul.f32 1.0, %v1223
    %v1225 = vxor.u32 %v1164, 2147483648
    %v1226 = vmul.f32 %v1225, 1.442695
    %v1227 = vpow.pop %v1226
    %v1228 = vadd.f32 %v1227, 1.0
    %v1229 = vrcp.pop %v1228
    %v1230 = vmul.f32 %v1228, %v1229
    %v1231 = vsub.f32 1.0, %v1230
    %v1232 = vmul.f32 %v1229, %v1231
    %v1233 = vadd.f32 %v1229, %v1232
    %vm1234 = vweird.f32 %v1228
    %vm1235 = vweird.f32 %v1229
    %vm1236 = vmor %vm1234, %vm1235
    %v1237 = vsel %vm1236, %v1229, %v1233
    %v1238 = vand.u32 2147483647, %v1228
    %vm1239 = vcmp.eq.f32.partialorder %v1238, 8.507059e+37
    %v1240 = vand.u32 %v1228, 2147483648
    %v1241 = vor.u32 1.1754944e-38, %v1240
    %v1242 = vsel %vm1239, %v1241, %v1237
    %v1243 = vmul.f32 1.0, %v1242
    %v1244 = vtanh.pop %v1184
    %v1245 = vxor.u32 %v1204, 2147483648
    %v1246 = vmul.f32 %v1245, 1.442695
    %v1247 = vpow.pop %v1246
    %v1248 = vadd.f32 %v1247, 1.0
    %v1249 = vrcp.pop %v1248
    %v1250 = vmul.f32 %v1248, %v1249
    %v1251 = vsub.f32 1.0, %v1250
    %v1252 = vmul.f32 %v1249, %v1251
    %v1253 = vadd.f32 %v1249, %v1252
    %vm1254 = vweird.f32 %v1248
    %vm1255 = vweird.f32 %v1249
    %vm1256 = vmor %vm1254, %vm1255
    %v1257 = vsel %vm1256, %v1249, %v1253
    %v1258 = vand.u32 2147483647, %v1248
    %vm1259 = vcmp.eq.f32.partialorder %v1258, 8.507059e+37
    %v1260 = vand.u32 %v1248, 2147483648
    %v1261 = vor.u32 1.1754944e-38, %v1260
    %v1262 = vsel %vm1259, %v1261, %v1257
    %v1263 = vmul.f32 1.0, %v1262
    %v1264 = vmul.f32 %v1243, %v1115
    %v1265 = vmul.f32 %v1224, %v1244
    %v1266 = vadd.f32 %v1264, %v1265
    %v1267 = vtanh.pop %v1266
    %v1268 = vmul.f32 %v1263, %v1267
    %v1269 = vrot.slane %v90, 7
    %v1270 = vrot.slane %v110, 7
    %v1271 = vrot.slane %v130, 7
    %v1272 = vrot.slane %v150, 7
    %1277 = vmatpush.msra.mxu0 %v212
    %1278 = vmatpush.msra.mxu0 %v208
    %1279 = vmatpush.msra.mxu0 %v204
    %1280 = vmatpush.msra.mxu0 %v200
    %1281 = vmatpush.msra.mxu0 %v196
    %1282 = vmatpush.msra.mxu0 %v192
    %1283 = vmatpush.msra.mxu0 %v188
    %1284 = vmatpush.msra.mxu0 %v184
    %1285 = vmatpush.msra.mxu0 %v180
    %1286 = vmatpush.msra.mxu0 %v176
    %1287 = vmatpush.msra.mxu0 %v172
    %1288 = vmatpush.msra.mxu0 %v168
    %1289 = vmatpush.msra.mxu0 %v164
    %1290 = vmatpush.msra.mxu0 %v160
    %1291 = vmatpush.msra.mxu0 %v156
    %1292 = vmatpush.msra.mxu0 %v152
    %1293 = vmatmul.f32.gmra.mxu0 %v1268
    %v1294 = vpop.f32.mrf.mxu0
    %v1295 = vadd.f32 %v1269, %v1294
    %1296 = vdwg.mxu0
    %1297 = vmatpush.msra.mxu0 %v213
    %1298 = vmatpush.msra.mxu0 %v209
    %1299 = vmatpush.msra.mxu0 %v205
    %1300 = vmatpush.msra.mxu0 %v201
    %1301 = vmatpush.msra.mxu0 %v197
    %1302 = vmatpush.msra.mxu0 %v193
    %1303 = vmatpush.msra.mxu0 %v189
    %1304 = vmatpush.msra.mxu0 %v185
    %1305 = vmatpush.msra.mxu0 %v181
    %1306 = vmatpush.msra.mxu0 %v177
    %1307 = vmatpush.msra.mxu0 %v173
    %1308 = vmatpush.msra.mxu0 %v169
    %1309 = vmatpush.msra.mxu0 %v165
    %1310 = vmatpush.msra.mxu0 %v161
    %1311 = vmatpush.msra.mxu0 %v157
    %1312 = vmatpush.msra.mxu0 %v153
    %1313 = vmatmul.f32.gmra.mxu0 %v1268
    %v1314 = vpop.f32.mrf.mxu0
    %v1315 = vadd.f32 %v1270, %v1314
    %1316 = vdwg.mxu0
    %1317 = vmatpush.msra.mxu0 %v214
    %1318 = vmatpush.msra.mxu0 %v210
    %1319 = vmatpush.msra.mxu0 %v206
    %1320 = vmatpush.msra.mxu0 %v202
    %1321 = vmatpush.msra.mxu0 %v198
    %1322 = vmatpush.msra.mxu0 %v194
    %1323 = vmatpush.msra.mxu0 %v190
    %1324 = vmatpush.msra.mxu0 %v186
    %1325 = vmatpush.msra.mxu0 %v182
    %1326 = vmatpush.msra.mxu0 %v178
    %1327 = vmatpush.msra.mxu0 %v174
    %1328 = vmatpush.msra.mxu0 %v170
    %1329 = vmatpush.msra.mxu0 %v166
    %1330 = vmatpush.msra.mxu0 %v162
    %1331 = vmatpush.msra.mxu0 %v158
    %1332 = vmatpush.msra.mxu0 %v154
    %1333 = vmatmul.f32.gmra.mxu0 %v1268
    %v1334 = vpop.f32.mrf.mxu0
    %v1335 = vadd.f32 %v1271, %v1334
    %1336 = vdwg.mxu0
    %1337 = vmatpush.msra.mxu0 %v215
    %1338 = vmatpush.msra.mxu0 %v211
    %1339 = vmatpush.msra.mxu0 %v207
    %1340 = vmatpush.msra.mxu0 %v203
    %1341 = vmatpush.msra.mxu0 %v199
    %1342 = vmatpush.msra.mxu0 %v195
    %1343 = vmatpush.msra.mxu0 %v191
    %1344 = vmatpush.msra.mxu0 %v187
    %1345 = vmatpush.msra.mxu0 %v183
    %1346 = vmatpush.msra.mxu0 %v179
    %1347 = vmatpush.msra.mxu0 %v175
    %1348 = vmatpush.msra.mxu0 %v171
    %1349 = vmatpush.msra.mxu0 %v167
    %1350 = vmatpush.msra.mxu0 %v163
    %1351 = vmatpush.msra.mxu0 %v159
    %1352 = vmatpush.msra.mxu0 %v155
    %1353 = vmatmul.f32.gmra.mxu0 %v1268
    %v1354 = vpop.f32.mrf.mxu0
    %v1355 = vadd.f32 %v1272, %v1354
    %1356 = vdwg.mxu0
    %v1357 = vxor.u32 %v1295, 2147483648
    %v1358 = vmul.f32 %v1357, 1.442695
    %v1359 = vpow.pop %v1358
    %v1360 = vadd.f32 %v1359, 1.0
    %v1361 = vrcp.pop %v1360
    %v1362 = vmul.f32 %v1360, %v1361
    %v1363 = vsub.f32 1.0, %v1362
    %v1364 = vmul.f32 %v1361, %v1363
    %v1365 = vadd.f32 %v1361, %v1364
    %vm1366 = vweird.f32 %v1360
    %vm1367 = vweird.f32 %v1361
    %vm1368 = vmor %vm1366, %vm1367
    %v1369 = vsel %vm1368, %v1361, %v1365
    %v1370 = vand.u32 2147483647, %v1360
    %vm1371 = vcmp.eq.f32.partialorder %v1370, 8.507059e+37
    %v1372 = vand.u32 %v1360, 2147483648
    %v1373 = vor.u32 1.1754944e-38, %v1372
    %v1374 = vsel %vm1371, %v1373, %v1369
    %v1375 = vmul.f32 1.0, %v1374
    %v1376 = vxor.u32 %v1315, 2147483648
    %v1377 = vmul.f32 %v1376, 1.442695
    %v1378 = vpow.pop %v1377
    %v1379 = vadd.f32 %v1378, 1.0
    %v1380 = vrcp.pop %v1379
    %v1381 = vmul.f32 %v1379, %v1380
    %v1382 = vsub.f32 1.0, %v1381
    %v1383 = vmul.f32 %v1380, %v1382
    %v1384 = vadd.f32 %v1380, %v1383
    %vm1385 = vweird.f32 %v1379
    %vm1386 = vweird.f32 %v1380
    %vm1387 = vmor %vm1385, %vm1386
    %v1388 = vsel %vm1387, %v1380, %v1384
    %v1389 = vand.u32 2147483647, %v1379
    %vm1390 = vcmp.eq.f32.partialorder %v1389, 8.507059e+37
    %v1391 = vand.u32 %v1379, 2147483648
    %v1392 = vor.u32 1.1754944e-38, %v1391
    %v1393 = vsel %vm1390, %v1392, %v1388
    %v1394 = vmul.f32 1.0, %v1393
    %v1395 = vtanh.pop %v1335
    %v1396 = vxor.u32 %v1355, 2147483648
    %v1397 = vmul.f32 %v1396, 1.442695
    %v1398 = vpow.pop %v1397
    %v1399 = vadd.f32 %v1398, 1.0
    %v1400 = vrcp.pop %v1399
    %v1401 = vmul.f32 %v1399, %v1400
    %v1402 = vsub.f32 1.0, %v1401
    %v1403 = vmul.f32 %v1400, %v1402
    %v1404 = vadd.f32 %v1400, %v1403
    %vm1405 = vweird.f32 %v1399
    %vm1406 = vweird.f32 %v1400
    %vm1407 = vmor %vm1405, %vm1406
    %v1408 = vsel %vm1407, %v1400, %v1404
    %v1409 = vand.u32 2147483647, %v1399
    %vm1410 = vcmp.eq.f32.partialorder %v1409, 8.507059e+37
    %v1411 = vand.u32 %v1399, 2147483648
    %v1412 = vor.u32 1.1754944e-38, %v1411
    %v1413 = vsel %vm1410, %v1412, %v1408
    %v1414 = vmul.f32 1.0, %v1413
    %v1415 = vmul.f32 %v1394, %v1266
    %v1416 = vmul.f32 %v1375, %v1395
    %v1417 = vadd.f32 %v1415, %v1416
    %v1418 = vtanh.pop %v1417
    %v1419 = vmul.f32 %v1414, %v1418
    %v1420 = vld [vmem:[%s4] sm:$0x1]
    %v1421 = vmul.f32 %v1419, %v1420
    %v1422 = vsel %vm63, %v1421, 0.0
    %1423 = vadd.xlane.f32.xlu0 %v1422
    %v1424 = vpop.xlane.xlu0 %1423
    %v1425 = vld [vmem:[#allocation2] sm:$0x1]
    %v1426 = vadd.f32 %v1424, %v1425
    %vm1427 = vcmask 0
    %1428 = vst.msk [vmem:[#allocation6] sm:$0x1] %vm1427, %v1426
    // Predicated region
    $region30: #{model_forward.1} parent=1 // pred_check
      _
    $region31: #{model_forward.1} parent=1 // pred_check_branch
      %1430 = sbr.rel (0) target = $region33
    $region32: #{model_forward.1} parent=1 // pred_region
      %1432 = vsyncadd [#allocation5], 0
      %s1434 = sshll.u32 [#allocation6], 4
      %s1435 = int_to_ptr.vmem [resolvable:$true] %s1434
      %s1436 = sshll.u32 %s6, 4
      %s1437 = int_to_ptr.hbm [resolvable:$true] %s1436
      %1439 = dma.vmem_to_hbm [thread:$0]  %s1435, 16, %s1437, [#allocation5]
    $region33: #{model_forward.1} parent=1 // pred_fallthru
      _
    // Predicated region
    $region34: #{model_forward.1} parent=1 // pred_check
      _
    $region35: #{model_forward.1} parent=1 // pred_check_branch
      %1441 = sbr.rel (0) target = $region37
    $region36: #{model_forward.1} parent=1 // pred_region
      %1443 = dma.done [#allocation5], 16
    $region37: #{model_forward.1} parent=1 // pred_fallthru
      _
    %1444 = vsyncpa [#allocation4], 1
    %1445 = vsyncpa [#allocation5], 1

</llo_original>
